<compile_context>
chip_gen: v7x
topology: tpu7x:2x2x1
jax: 0.10.0
libtpu: 0.0.40
codegen_flags: <defaults>
</compile_context>

<pallas_src>
import jax
import jax.numpy as jnp
from jax import lax
from jax.experimental import pallas as pl
from jax.experimental.pallas import tpu as pltpu

NEG_SLOPE = 0.01          # torch.nn.LeakyReLU default negative_slope
EPS = 1e-5                # InstanceNorm3d eps
LANES = 128
SUBLANES = 8
# Matmul operand dtype for the MXU. jnp.bfloat16 engages the native bf16 MXU
# path (f32 accumulation kept) and halves matmul-operand traffic, at ~1e-2
# numerical tolerance; the default f32 keeps exact parity with PyTorch.
MATMUL_DTYPE = jnp.float32


def _round_up(x, m):
    return (x + m - 1) // m * m


def _make_fused_kernel(depth, D, H, W, Sp_pad):
    Wp, Hp = W + 2, H + 2
    plane = Hp * Wp
    # Flat-index offset of each of the 27 taps over the padded volume.
    tap_offsets = [(kd - 1) * plane + (kh - 1) * Wp + (kw - 1)
                   for kd in range(3) for kh in range(3) for kw in range(3)]
    inv_count = 1.0 / float(D * H * W)

    def kernel(x_ref, mask_ref, *refs):
        o_ref = refs[-1]
        param_refs = refs[:-1]
        mask = mask_ref[...]                       # (1, Sp_pad), 1.0 on valid voxels
        x = x_ref[0]                               # (C0_pad, Sp_pad) f32

        for l in range(depth):
            w_ref, b_ref, g_ref, bt_ref = param_refs[4 * l:4 * l + 4]

            # In-kernel im2col: one static lane-roll per tap, concatenated
            # along sublanes into the folded-K matmul operand.  For valid
            # output voxels the shifted reads never wrap, and the padding
            # ring is already zero, so no masks are needed here.
            slabs = []
            for off in tap_offsets:
                if off == 0:
                    slabs.append(x)
                else:
                    slabs.append(pltpu.roll(x, (-off) % Sp_pad, axis=1))
            p = jnp.concatenate(slabs, axis=0)     # (27*C_pad, Sp_pad)

            # Single folded MXU matmul (all 27 taps, all input channels).
            y = jnp.dot(w_ref[...].astype(MATMUL_DTYPE),
                        p.astype(MATMUL_DTYPE),
                        preferred_element_type=jnp.float32)   # (Cout_pad, Sp_pad)
            y = y + b_ref[...]

            # InstanceNorm3d over valid voxels only, one-pass statistics.
            ym = y * mask
            s1 = jnp.sum(ym, axis=1, keepdims=True)
            s2 = jnp.sum(ym * ym, axis=1, keepdims=True)
            mean = s1 * inv_count
            var = jnp.maximum(s2 * inv_count - mean * mean, 0.0)
            z = (y - mean) * lax.rsqrt(var + EPS) * g_ref[...] + bt_ref[...]

            # LeakyReLU, then re-zero the padding ring (+ lane tail) so the
            # next layer's conv sees correct zero padding.
            z = jnp.where(z >= 0, z, NEG_SLOPE * z)
            x = z * mask

        o_ref[0] = x.astype(o_ref.dtype)

    return kernel


def conv3d_sequence(x_ncdhw, params):
    """Forward pass of Conv3DSequence (NCDHW in, NCDHW out)."""
    N, Cin, D, H, W = x_ncdhw.shape
    depth = len(params)
    Dp, Hp, Wp = D + 2, H + 2, W + 2
    Sp = Dp * Hp * Wp
    Sp_pad = _round_up(Sp, LANES)

    # Per-layer padded channel widths.  The fused kernel feeds layer l+1 with
    # layer l's padded output, so the padded input width of layer l>0 equals
    # the padded output width of layer l-1.
    couts = [p[0].shape[0] for p in params]
    cin_pads = [_round_up(Cin, SUBLANES)]
    cout_pads = []
    for co in couts:
        cout_pads.append(_round_up(co, SUBLANES))
        cin_pads.append(cout_pads[-1])

    # ---- input: zero-pad spatially, flatten spatial onto lanes, pad C / Sp ----
    xp = jnp.pad(x_ncdhw, ((0, 0), (0, 0), (1, 1), (1, 1), (1, 1)))
    xf = xp.reshape(N, Cin, Sp)
    xf = jnp.pad(xf, ((0, 0), (0, cin_pads[0] - Cin), (0, Sp_pad - Sp)))

    # ---- valid-voxel mask over the padded flat layout (computed host-side) ----
    mask3d = jnp.pad(jnp.ones((D, H, W), jnp.float32), ((1, 1),) * 3)
    mask = jnp.pad(mask3d.reshape(1, Sp), ((0, 0), (0, Sp_pad - Sp)))

    # ---- params: fold taps into the contraction dim, pad channels ----
    flat_params = []
    param_specs = []
    for l, (w, b, g, bt) in enumerate(params):
        co, ci = w.shape[0], w.shape[1]
        assert w.shape[2:] == (3, 3, 3)
        assert ci == (Cin if l == 0 else couts[l - 1])
        cip, cop = cin_pads[l], cout_pads[l]
        # (Cout, Cin, kd, kh, kw) -> (Cout_pad, 27*Cin_pad), tap-major rows in
        # (kd, kh, kw, c) order, matching the in-kernel concat order.
        wr = jnp.transpose(w, (0, 2, 3, 4, 1))                 # (Co,3,3,3,Ci)
        wr = jnp.pad(wr, ((0, cop - co), (0, 0), (0, 0), (0, 0), (0, cip - ci)))
        wr = wr.reshape(cop, 27 * cip)
        br = jnp.pad(b, (0, cop - co)).reshape(cop, 1)
        gr = jnp.pad(g, (0, cop - co)).reshape(cop, 1)
        btr = jnp.pad(bt, (0, cop - co)).reshape(cop, 1)
        flat_params += [wr, br, gr, btr]
        param_specs += [pl.BlockSpec(a.shape, lambda n: (0, 0))
                        for a in (wr, br, gr, btr)]

    kernel = _make_fused_kernel(depth, D, H, W, Sp_pad)

    out = pl.pallas_call(
        kernel,
        out_shape=jax.ShapeDtypeStruct((N, cout_pads[-1], Sp_pad), jnp.float32),
        grid_spec=pltpu.PrefetchScalarGridSpec(
            num_scalar_prefetch=0,
            grid=(N,),
            in_specs=[
                pl.BlockSpec((1, cin_pads[0], Sp_pad), lambda n: (n, 0, 0)),
                pl.BlockSpec((1, Sp_pad), lambda n: (0, 0)),
            ] + param_specs,
            out_specs=pl.BlockSpec((1, cout_pads[-1], Sp_pad),
                                   lambda n: (n, 0, 0)),
        ),
        compiler_params=pltpu.CompilerParams(
            dimension_semantics=("parallel",),
            # Raised scoped-VMEM cap (kept <= 64 MiB so it is valid on v7x);
            # the example shapes only need a few MiB.
            vmem_limit_bytes=48 * 1024 * 1024,
        ),
    )(xf, mask, *flat_params)

    # Drop channel / lane padding and the spatial halo.
    out = out[:, :couts[-1], :Sp].reshape(N, couts[-1], Dp, Hp, Wp)
    return out[:, :, 1:1 + D, 1:1 + H, 1:1 + W]


# ------------------------- pure-JAX reference -------------------------
def _ref_sequence(x, params):
    y = x
    for (w, b, g, bt) in params:
        y = lax.conv_general_dilated(
            y, w, (1, 1, 1), [(1, 1)] * 3,
            dimension_numbers=('NCDHW', 'OIDHW', 'NCDHW'),
            precision=lax.Precision.HIGHEST)
        y = y + b.reshape(1, -1, 1, 1, 1)
        mean = jnp.mean(y, axis=(2, 3, 4), keepdims=True)
        var = jnp.mean((y - mean) ** 2, axis=(2, 3, 4), keepdims=True)
        y = (y - mean) * lax.rsqrt(var + EPS)
        y = y * g.reshape(1, -1, 1, 1, 1) + bt.reshape(1, -1, 1, 1, 1)
        y = jnp.where(y >= 0, y, NEG_SLOPE * y)
    return y


def _make_params(key, input_dim, output_dim, depth):
    # Shapes mirror nn.Conv3d / nn.InstanceNorm3d(affine=True).
    # NOTE: InstanceNorm3d momentum / running stats are unused at forward
    # time (track_running_stats defaults to False) and are not modeled.
    params = []
    cin = input_dim
    for _ in range(depth):
        key, kw, kb, kg, kbt = jax.random.split(key, 5)
        fan_in = cin * 27
        w = (jax.random.normal(kw, (output_dim, cin, 3, 3, 3), jnp.float32)
             / jnp.sqrt(jnp.float32(fan_in)))
        b = 0.01 * jax.random.normal(kb, (output_dim,), jnp.float32)
        g = 1.0 + 0.1 * jax.random.normal(kg, (output_dim,), jnp.float32)
        bt = 0.1 * jax.random.normal(kbt, (output_dim,), jnp.float32)
        params.append((w, b, g, bt))
        cin = output_dim
    return params


if __name__ == "__main__":
    key = jax.random.PRNGKey(0)
    N, Cin, Cout = 2, 4, 8
    D = H = W = 8

    key, kx = jax.random.split(key)
    x = jax.random.normal(kx, (N, Cin, D, H, W), jnp.float32)   # NCDHW, as PyTorch
    params = _make_params(key, Cin, Cout, depth=2)

    run = jax.jit(lambda xx: conv3d_sequence(xx, params))
    out = jax.block_until_ready(run(x))

    ref = jax.block_until_ready(_ref_sequence(x, params))
    assert out.shape == (N, Cout, D, H, W), out.shape
    max_err = float(jnp.max(jnp.abs(out - ref)))
    assert jnp.allclose(out, ref, atol=3e-3, rtol=3e-3), max_err
    print("KERNEL_OK")
</pallas_src>

<mosaic_0001>
module attributes {stable_mosaic.version = 11 : i64} {
  func.func @kernel(%arg0: i32, %arg1: memref<1x8x1024xf32, #tpu.memory_space<vmem>>, %arg2: memref<1x1024xf32, #tpu.memory_space<vmem>>, %arg3: memref<8x216xf32, #tpu.memory_space<vmem>>, %arg4: memref<8x1xf32, #tpu.memory_space<vmem>>, %arg5: memref<8x1xf32, #tpu.memory_space<vmem>>, %arg6: memref<8x1xf32, #tpu.memory_space<vmem>>, %arg7: memref<8x216xf32, #tpu.memory_space<vmem>>, %arg8: memref<8x1xf32, #tpu.memory_space<vmem>>, %arg9: memref<8x1xf32, #tpu.memory_space<vmem>>, %arg10: memref<8x1xf32, #tpu.memory_space<vmem>>, %arg11: memref<1x8x1024xf32, #tpu.memory_space<vmem>>) attributes {dimension_semantics = [#tpu.dimension_semantics<parallel>], iteration_bounds = array<i64: 2>, scalar_prefetch = 0 : i64, scratch_operands = 0 : i64, tpu.core_type = #tpu.core_type<tc>, window_params = [{transform_indices = @transform_0, window_bounds = array<i64: 1, 8, 1024>}, {pipeline_mode = #tpu.pipeline_mode<synchronous>, transform_indices = @transform_1, window_bounds = array<i64: 1, 1024>}, {pipeline_mode = #tpu.pipeline_mode<synchronous>, transform_indices = @transform_2, window_bounds = array<i64: 8, 216>}, {pipeline_mode = #tpu.pipeline_mode<synchronous>, transform_indices = @transform_3, window_bounds = array<i64: 8, 1>}, {pipeline_mode = #tpu.pipeline_mode<synchronous>, transform_indices = @transform_4, window_bounds = array<i64: 8, 1>}, {pipeline_mode = #tpu.pipeline_mode<synchronous>, transform_indices = @transform_5, window_bounds = array<i64: 8, 1>}, {pipeline_mode = #tpu.pipeline_mode<synchronous>, transform_indices = @transform_6, window_bounds = array<i64: 8, 216>}, {pipeline_mode = #tpu.pipeline_mode<synchronous>, transform_indices = @transform_7, window_bounds = array<i64: 8, 1>}, {pipeline_mode = #tpu.pipeline_mode<synchronous>, transform_indices = @transform_8, window_bounds = array<i64: 8, 1>}, {pipeline_mode = #tpu.pipeline_mode<synchronous>, transform_indices = @transform_9, window_bounds = array<i64: 8, 1>}, {transform_indices = @transform_10, window_bounds = array<i64: 1, 8, 1024>}]} {
    %c0 = arith.constant 0 : index
    %c0_0 = arith.constant 0 : index
    %0 = vector.load %arg2[%c0, %c0_0] : memref<1x1024xf32, #tpu.memory_space<vmem>>, vector<1x1024xf32>
    %c0_1 = arith.constant 0 : index
    %c0_2 = arith.constant 0 : index
    %c0_3 = arith.constant 0 : index
    %1 = vector.load %arg1[%c0_1, %c0_2, %c0_3] : memref<1x8x1024xf32, #tpu.memory_space<vmem>>, vector<1x8x1024xf32>
    %2 = vector.shape_cast %1 : vector<1x8x1024xf32> to vector<8x1024xf32>
    %c111_i32 = arith.constant 111 : i32
    %3 = tpu.dynamic_rotate %2 by %c111_i32 dim 1 : vector<8x1024xf32>, i32 -> vector<8x1024xf32>
    %c110_i32 = arith.constant 110 : i32
    %4 = tpu.dynamic_rotate %2 by %c110_i32 dim 1 : vector<8x1024xf32>, i32 -> vector<8x1024xf32>
    %c109_i32 = arith.constant 109 : i32
    %5 = tpu.dynamic_rotate %2 by %c109_i32 dim 1 : vector<8x1024xf32>, i32 -> vector<8x1024xf32>
    %c101_i32 = arith.constant 101 : i32
    %6 = tpu.dynamic_rotate %2 by %c101_i32 dim 1 : vector<8x1024xf32>, i32 -> vector<8x1024xf32>
    %c100_i32 = arith.constant 100 : i32
    %7 = tpu.dynamic_rotate %2 by %c100_i32 dim 1 : vector<8x1024xf32>, i32 -> vector<8x1024xf32>
    %c99_i32 = arith.constant 99 : i32
    %8 = tpu.dynamic_rotate %2 by %c99_i32 dim 1 : vector<8x1024xf32>, i32 -> vector<8x1024xf32>
    %c91_i32 = arith.constant 91 : i32
    %9 = tpu.dynamic_rotate %2 by %c91_i32 dim 1 : vector<8x1024xf32>, i32 -> vector<8x1024xf32>
    %c90_i32 = arith.constant 90 : i32
    %10 = tpu.dynamic_rotate %2 by %c90_i32 dim 1 : vector<8x1024xf32>, i32 -> vector<8x1024xf32>
    %c89_i32 = arith.constant 89 : i32
    %11 = tpu.dynamic_rotate %2 by %c89_i32 dim 1 : vector<8x1024xf32>, i32 -> vector<8x1024xf32>
    %c11_i32 = arith.constant 11 : i32
    %12 = tpu.dynamic_rotate %2 by %c11_i32 dim 1 : vector<8x1024xf32>, i32 -> vector<8x1024xf32>
    %c10_i32 = arith.constant 10 : i32
    %13 = tpu.dynamic_rotate %2 by %c10_i32 dim 1 : vector<8x1024xf32>, i32 -> vector<8x1024xf32>
    %c9_i32 = arith.constant 9 : i32
    %14 = tpu.dynamic_rotate %2 by %c9_i32 dim 1 : vector<8x1024xf32>, i32 -> vector<8x1024xf32>
    %c1_i32 = arith.constant 1 : i32
    %15 = tpu.dynamic_rotate %2 by %c1_i32 dim 1 : vector<8x1024xf32>, i32 -> vector<8x1024xf32>
    %c1023_i32 = arith.constant 1023 : i32
    %16 = tpu.dynamic_rotate %2 by %c1023_i32 dim 1 : vector<8x1024xf32>, i32 -> vector<8x1024xf32>
    %c1015_i32 = arith.constant 1015 : i32
    %17 = tpu.dynamic_rotate %2 by %c1015_i32 dim 1 : vector<8x1024xf32>, i32 -> vector<8x1024xf32>
    %c1014_i32 = arith.constant 1014 : i32
    %18 = tpu.dynamic_rotate %2 by %c1014_i32 dim 1 : vector<8x1024xf32>, i32 -> vector<8x1024xf32>
    %c1013_i32 = arith.constant 1013 : i32
    %19 = tpu.dynamic_rotate %2 by %c1013_i32 dim 1 : vector<8x1024xf32>, i32 -> vector<8x1024xf32>
    %c935_i32 = arith.constant 935 : i32
    %20 = tpu.dynamic_rotate %2 by %c935_i32 dim 1 : vector<8x1024xf32>, i32 -> vector<8x1024xf32>
    %c934_i32 = arith.constant 934 : i32
    %21 = tpu.dynamic_rotate %2 by %c934_i32 dim 1 : vector<8x1024xf32>, i32 -> vector<8x1024xf32>
    %c933_i32 = arith.constant 933 : i32
    %22 = tpu.dynamic_rotate %2 by %c933_i32 dim 1 : vector<8x1024xf32>, i32 -> vector<8x1024xf32>
    %c925_i32 = arith.constant 925 : i32
    %23 = tpu.dynamic_rotate %2 by %c925_i32 dim 1 : vector<8x1024xf32>, i32 -> vector<8x1024xf32>
    %c924_i32 = arith.constant 924 : i32
    %24 = tpu.dynamic_rotate %2 by %c924_i32 dim 1 : vector<8x1024xf32>, i32 -> vector<8x1024xf32>
    %c923_i32 = arith.constant 923 : i32
    %25 = tpu.dynamic_rotate %2 by %c923_i32 dim 1 : vector<8x1024xf32>, i32 -> vector<8x1024xf32>
    %c915_i32 = arith.constant 915 : i32
    %26 = tpu.dynamic_rotate %2 by %c915_i32 dim 1 : vector<8x1024xf32>, i32 -> vector<8x1024xf32>
    %c914_i32 = arith.constant 914 : i32
    %27 = tpu.dynamic_rotate %2 by %c914_i32 dim 1 : vector<8x1024xf32>, i32 -> vector<8x1024xf32>
    %c913_i32 = arith.constant 913 : i32
    %28 = tpu.dynamic_rotate %2 by %c913_i32 dim 1 : vector<8x1024xf32>, i32 -> vector<8x1024xf32>
    %29 = tpu.concatenate %3, %4, %5, %6, %7, %8, %9, %10, %11, %12, %13, %14, %15, %2, %16, %17 in 0 : vector<8x1024xf32>, vector<8x1024xf32>, vector<8x1024xf32>, vector<8x1024xf32>, vector<8x1024xf32>, vector<8x1024xf32>, vector<8x1024xf32>, vector<8x1024xf32>, vector<8x1024xf32>, vector<8x1024xf32>, vector<8x1024xf32>, vector<8x1024xf32>, vector<8x1024xf32>, vector<8x1024xf32>, vector<8x1024xf32>, vector<8x1024xf32> -> vector<128x1024xf32>
    %30 = tpu.concatenate %18, %19, %20, %21, %22, %23, %24, %25, %26, %27, %28 in 0 : vector<8x1024xf32>, vector<8x1024xf32>, vector<8x1024xf32>, vector<8x1024xf32>, vector<8x1024xf32>, vector<8x1024xf32>, vector<8x1024xf32>, vector<8x1024xf32>, vector<8x1024xf32>, vector<8x1024xf32>, vector<8x1024xf32> -> vector<88x1024xf32>
    %31 = tpu.concatenate %29, %30 in 0 : vector<128x1024xf32>, vector<88x1024xf32> -> vector<216x1024xf32>
    %c0_4 = arith.constant 0 : index
    %c0_5 = arith.constant 0 : index
    %32 = vector.load %arg3[%c0_4, %c0_5] : memref<8x216xf32, #tpu.memory_space<vmem>>, vector<8x216xf32>
    %cst = arith.constant dense<0.000000e+00> : vector<8x1024xf32>
    %33 = tpu.matmul %32, %31, %cst {dimension_numbers = #tpu.dot_dimension_numbers<[1], [0], [0], [1], [0, 0, 1, 1], [], []>} : vector<8x216xf32>, vector<216x1024xf32>, vector<8x1024xf32> -> vector<8x1024xf32>
    %c0_6 = arith.constant 0 : index
    %c0_7 = arith.constant 0 : index
    %34 = vector.load %arg4[%c0_6, %c0_7] : memref<8x1xf32, #tpu.memory_space<vmem>>, vector<8x1xf32>
    %35 = vector.broadcast %34 : vector<8x1xf32> to vector<8x1024xf32>
    %36 = arith.addf %33, %35 : vector<8x1024xf32>
    %37 = vector.broadcast %0 : vector<1x1024xf32> to vector<8x1024xf32>
    %38 = arith.mulf %36, %37 : vector<8x1024xf32>
    %cst_8 = arith.constant dense<0.000000e+00> : vector<8xf32>
    %39 = vector.multi_reduction <add>, %38, %cst_8 [1] : vector<8x1024xf32> to vector<8xf32>
    %40 = vector.shape_cast %39 : vector<8xf32> to vector<8x1xf32>
    %41 = arith.mulf %38, %38 : vector<8x1024xf32>
    %cst_9 = arith.constant dense<0.000000e+00> : vector<8xf32>
    %42 = vector.multi_reduction <add>, %41, %cst_9 [1] : vector<8x1024xf32> to vector<8xf32>
    %43 = vector.shape_cast %42 : vector<8xf32> to vector<8x1xf32>
    %cst_10 = arith.constant 0.001953125 : f32
    %44 = vector.broadcast %cst_10 : f32 to vector<8x1xf32>
    %45 = arith.mulf %40, %44 : vector<8x1xf32>
    %cst_11 = arith.constant 0.001953125 : f32
    %46 = vector.broadcast %cst_11 : f32 to vector<8x1xf32>
    %47 = arith.mulf %43, %46 : vector<8x1xf32>
    %48 = arith.mulf %45, %45 : vector<8x1xf32>
    %49 = arith.subf %47, %48 : vector<8x1xf32>
    %cst_12 = arith.constant 0.000000e+00 : f32
    %50 = vector.broadcast %cst_12 : f32 to vector<8x1xf32>
    %51 = arith.maximumf %49, %50 : vector<8x1xf32>
    %52 = vector.broadcast %45 : vector<8x1xf32> to vector<8x1024xf32>
    %53 = arith.subf %36, %52 : vector<8x1024xf32>
    %cst_13 = arith.constant 9.99999974E-6 : f32
    %54 = vector.broadcast %cst_13 : f32 to vector<8x1xf32>
    %55 = arith.addf %51, %54 : vector<8x1xf32>
    %56 = math.rsqrt %55 : vector<8x1xf32>
    %57 = vector.broadcast %56 : vector<8x1xf32> to vector<8x1024xf32>
    %58 = arith.mulf %53, %57 : vector<8x1024xf32>
    %c0_14 = arith.constant 0 : index
    %c0_15 = arith.constant 0 : index
    %59 = vector.load %arg5[%c0_14, %c0_15] : memref<8x1xf32, #tpu.memory_space<vmem>>, vector<8x1xf32>
    %60 = vector.broadcast %59 : vector<8x1xf32> to vector<8x1024xf32>
    %61 = arith.mulf %58, %60 : vector<8x1024xf32>
    %c0_16 = arith.constant 0 : index
    %c0_17 = arith.constant 0 : index
    %62 = vector.load %arg6[%c0_16, %c0_17] : memref<8x1xf32, #tpu.memory_space<vmem>>, vector<8x1xf32>
    %63 = vector.broadcast %62 : vector<8x1xf32> to vector<8x1024xf32>
    %64 = arith.addf %61, %63 : vector<8x1024xf32>
    %cst_18 = arith.constant 0.000000e+00 : f32
    %65 = vector.broadcast %cst_18 : f32 to vector<8x1024xf32>
    %66 = arith.cmpf oge, %64, %65 : vector<8x1024xf32>
    %cst_19 = arith.constant 0.00999999977 : f32
    %67 = vector.broadcast %cst_19 : f32 to vector<8x1024xf32>
    %68 = arith.mulf %67, %64 : vector<8x1024xf32>
    %69 = arith.select %66, %64, %68 : vector<8x1024xi1>, vector<8x1024xf32>
    %70 = vector.broadcast %0 : vector<1x1024xf32> to vector<8x1024xf32>
    %71 = arith.mulf %69, %70 : vector<8x1024xf32>
    %c111_i32_20 = arith.constant 111 : i32
    %72 = tpu.dynamic_rotate %71 by %c111_i32_20 dim 1 : vector<8x1024xf32>, i32 -> vector<8x1024xf32>
    %c110_i32_21 = arith.constant 110 : i32
    %73 = tpu.dynamic_rotate %71 by %c110_i32_21 dim 1 : vector<8x1024xf32>, i32 -> vector<8x1024xf32>
    %c109_i32_22 = arith.constant 109 : i32
    %74 = tpu.dynamic_rotate %71 by %c109_i32_22 dim 1 : vector<8x1024xf32>, i32 -> vector<8x1024xf32>
    %c101_i32_23 = arith.constant 101 : i32
    %75 = tpu.dynamic_rotate %71 by %c101_i32_23 dim 1 : vector<8x1024xf32>, i32 -> vector<8x1024xf32>
    %c100_i32_24 = arith.constant 100 : i32
    %76 = tpu.dynamic_rotate %71 by %c100_i32_24 dim 1 : vector<8x1024xf32>, i32 -> vector<8x1024xf32>
    %c99_i32_25 = arith.constant 99 : i32
    %77 = tpu.dynamic_rotate %71 by %c99_i32_25 dim 1 : vector<8x1024xf32>, i32 -> vector<8x1024xf32>
    %c91_i32_26 = arith.constant 91 : i32
    %78 = tpu.dynamic_rotate %71 by %c91_i32_26 dim 1 : vector<8x1024xf32>, i32 -> vector<8x1024xf32>
    %c90_i32_27 = arith.constant 90 : i32
    %79 = tpu.dynamic_rotate %71 by %c90_i32_27 dim 1 : vector<8x1024xf32>, i32 -> vector<8x1024xf32>
    %c89_i32_28 = arith.constant 89 : i32
    %80 = tpu.dynamic_rotate %71 by %c89_i32_28 dim 1 : vector<8x1024xf32>, i32 -> vector<8x1024xf32>
    %c11_i32_29 = arith.constant 11 : i32
    %81 = tpu.dynamic_rotate %71 by %c11_i32_29 dim 1 : vector<8x1024xf32>, i32 -> vector<8x1024xf32>
    %c10_i32_30 = arith.constant 10 : i32
    %82 = tpu.dynamic_rotate %71 by %c10_i32_30 dim 1 : vector<8x1024xf32>, i32 -> vector<8x1024xf32>
    %c9_i32_31 = arith.constant 9 : i32
    %83 = tpu.dynamic_rotate %71 by %c9_i32_31 dim 1 : vector<8x1024xf32>, i32 -> vector<8x1024xf32>
    %c1_i32_32 = arith.constant 1 : i32
    %84 = tpu.dynamic_rotate %71 by %c1_i32_32 dim 1 : vector<8x1024xf32>, i32 -> vector<8x1024xf32>
    %c1023_i32_33 = arith.constant 1023 : i32
    %85 = tpu.dynamic_rotate %71 by %c1023_i32_33 dim 1 : vector<8x1024xf32>, i32 -> vector<8x1024xf32>
    %c1015_i32_34 = arith.constant 1015 : i32
    %86 = tpu.dynamic_rotate %71 by %c1015_i32_34 dim 1 : vector<8x1024xf32>, i32 -> vector<8x1024xf32>
    %c1014_i32_35 = arith.constant 1014 : i32
    %87 = tpu.dynamic_rotate %71 by %c1014_i32_35 dim 1 : vector<8x1024xf32>, i32 -> vector<8x1024xf32>
    %c1013_i32_36 = arith.constant 1013 : i32
    %88 = tpu.dynamic_rotate %71 by %c1013_i32_36 dim 1 : vector<8x1024xf32>, i32 -> vector<8x1024xf32>
    %c935_i32_37 = arith.constant 935 : i32
    %89 = tpu.dynamic_rotate %71 by %c935_i32_37 dim 1 : vector<8x1024xf32>, i32 -> vector<8x1024xf32>
    %c934_i32_38 = arith.constant 934 : i32
    %90 = tpu.dynamic_rotate %71 by %c934_i32_38 dim 1 : vector<8x1024xf32>, i32 -> vector<8x1024xf32>
    %c933_i32_39 = arith.constant 933 : i32
    %91 = tpu.dynamic_rotate %71 by %c933_i32_39 dim 1 : vector<8x1024xf32>, i32 -> vector<8x1024xf32>
    %c925_i32_40 = arith.constant 925 : i32
    %92 = tpu.dynamic_rotate %71 by %c925_i32_40 dim 1 : vector<8x1024xf32>, i32 -> vector<8x1024xf32>
    %c924_i32_41 = arith.constant 924 : i32
    %93 = tpu.dynamic_rotate %71 by %c924_i32_41 dim 1 : vector<8x1024xf32>, i32 -> vector<8x1024xf32>
    %c923_i32_42 = arith.constant 923 : i32
    %94 = tpu.dynamic_rotate %71 by %c923_i32_42 dim 1 : vector<8x1024xf32>, i32 -> vector<8x1024xf32>
    %c915_i32_43 = arith.constant 915 : i32
    %95 = tpu.dynamic_rotate %71 by %c915_i32_43 dim 1 : vector<8x1024xf32>, i32 -> vector<8x1024xf32>
    %c914_i32_44 = arith.constant 914 : i32
    %96 = tpu.dynamic_rotate %71 by %c914_i32_44 dim 1 : vector<8x1024xf32>, i32 -> vector<8x1024xf32>
    %c913_i32_45 = arith.constant 913 : i32
    %97 = tpu.dynamic_rotate %71 by %c913_i32_45 dim 1 : vector<8x1024xf32>, i32 -> vector<8x1024xf32>
    %98 = tpu.concatenate %72, %73, %74, %75, %76, %77, %78, %79, %80, %81, %82, %83, %84, %71, %85, %86 in 0 : vector<8x1024xf32>, vector<8x1024xf32>, vector<8x1024xf32>, vector<8x1024xf32>, vector<8x1024xf32>, vector<8x1024xf32>, vector<8x1024xf32>, vector<8x1024xf32>, vector<8x1024xf32>, vector<8x1024xf32>, vector<8x1024xf32>, vector<8x1024xf32>, vector<8x1024xf32>, vector<8x1024xf32>, vector<8x1024xf32>, vector<8x1024xf32> -> vector<128x1024xf32>
    %99 = tpu.concatenate %87, %88, %89, %90, %91, %92, %93, %94, %95, %96, %97 in 0 : vector<8x1024xf32>, vector<8x1024xf32>, vector<8x1024xf32>, vector<8x1024xf32>, vector<8x1024xf32>, vector<8x1024xf32>, vector<8x1024xf32>, vector<8x1024xf32>, vector<8x1024xf32>, vector<8x1024xf32>, vector<8x1024xf32> -> vector<88x1024xf32>
    %100 = tpu.concatenate %98, %99 in 0 : vector<128x1024xf32>, vector<88x1024xf32> -> vector<216x1024xf32>
    %c0_46 = arith.constant 0 : index
    %c0_47 = arith.constant 0 : index
    %101 = vector.load %arg7[%c0_46, %c0_47] : memref<8x216xf32, #tpu.memory_space<vmem>>, vector<8x216xf32>
    %cst_48 = arith.constant dense<0.000000e+00> : vector<8x1024xf32>
    %102 = tpu.matmul %101, %100, %cst_48 {dimension_numbers = #tpu.dot_dimension_numbers<[1], [0], [0], [1], [0, 0, 1, 1], [], []>} : vector<8x216xf32>, vector<216x1024xf32>, vector<8x1024xf32> -> vector<8x1024xf32>
    %c0_49 = arith.constant 0 : index
    %c0_50 = arith.constant 0 : index
    %103 = vector.load %arg8[%c0_49, %c0_50] : memref<8x1xf32, #tpu.memory_space<vmem>>, vector<8x1xf32>
    %104 = vector.broadcast %103 : vector<8x1xf32> to vector<8x1024xf32>
    %105 = arith.addf %102, %104 : vector<8x1024xf32>
    %106 = vector.broadcast %0 : vector<1x1024xf32> to vector<8x1024xf32>
    %107 = arith.mulf %105, %106 : vector<8x1024xf32>
    %cst_51 = arith.constant dense<0.000000e+00> : vector<8xf32>
    %108 = vector.multi_reduction <add>, %107, %cst_51 [1] : vector<8x1024xf32> to vector<8xf32>
    %109 = vector.shape_cast %108 : vector<8xf32> to vector<8x1xf32>
    %110 = arith.mulf %107, %107 : vector<8x1024xf32>
    %cst_52 = arith.constant dense<0.000000e+00> : vector<8xf32>
    %111 = vector.multi_reduction <add>, %110, %cst_52 [1] : vector<8x1024xf32> to vector<8xf32>
    %112 = vector.shape_cast %111 : vector<8xf32> to vector<8x1xf32>
    %cst_53 = arith.constant 0.001953125 : f32
    %113 = vector.broadcast %cst_53 : f32 to vector<8x1xf32>
    %114 = arith.mulf %109, %113 : vector<8x1xf32>
    %cst_54 = arith.constant 0.001953125 : f32
    %115 = vector.broadcast %cst_54 : f32 to vector<8x1xf32>
    %116 = arith.mulf %112, %115 : vector<8x1xf32>
    %117 = arith.mulf %114, %114 : vector<8x1xf32>
    %118 = arith.subf %116, %117 : vector<8x1xf32>
    %cst_55 = arith.constant 0.000000e+00 : f32
    %119 = vector.broadcast %cst_55 : f32 to vector<8x1xf32>
    %120 = arith.maximumf %118, %119 : vector<8x1xf32>
    %121 = vector.broadcast %114 : vector<8x1xf32> to vector<8x1024xf32>
    %122 = arith.subf %105, %121 : vector<8x1024xf32>
    %cst_56 = arith.constant 9.99999974E-6 : f32
    %123 = vector.broadcast %cst_56 : f32 to vector<8x1xf32>
    %124 = arith.addf %120, %123 : vector<8x1xf32>
    %125 = math.rsqrt %124 : vector<8x1xf32>
    %126 = vector.broadcast %125 : vector<8x1xf32> to vector<8x1024xf32>
    %127 = arith.mulf %122, %126 : vector<8x1024xf32>
    %c0_57 = arith.constant 0 : index
    %c0_58 = arith.constant 0 : index
    %128 = vector.load %arg9[%c0_57, %c0_58] : memref<8x1xf32, #tpu.memory_space<vmem>>, vector<8x1xf32>
    %129 = vector.broadcast %128 : vector<8x1xf32> to vector<8x1024xf32>
    %130 = arith.mulf %127, %129 : vector<8x1024xf32>
    %c0_59 = arith.constant 0 : index
    %c0_60 = arith.constant 0 : index
    %131 = vector.load %arg10[%c0_59, %c0_60] : memref<8x1xf32, #tpu.memory_space<vmem>>, vector<8x1xf32>
    %132 = vector.broadcast %131 : vector<8x1xf32> to vector<8x1024xf32>
    %133 = arith.addf %130, %132 : vector<8x1024xf32>
    %cst_61 = arith.constant 0.000000e+00 : f32
    %134 = vector.broadcast %cst_61 : f32 to vector<8x1024xf32>
    %135 = arith.cmpf oge, %133, %134 : vector<8x1024xf32>
    %cst_62 = arith.constant 0.00999999977 : f32
    %136 = vector.broadcast %cst_62 : f32 to vector<8x1024xf32>
    %137 = arith.mulf %136, %133 : vector<8x1024xf32>
    %138 = arith.select %135, %133, %137 : vector<8x1024xi1>, vector<8x1024xf32>
    %139 = vector.broadcast %0 : vector<1x1024xf32> to vector<8x1024xf32>
    %140 = arith.mulf %138, %139 : vector<8x1024xf32>
    %c0_63 = arith.constant 0 : index
    %c0_64 = arith.constant 0 : index
    %c0_65 = arith.constant 0 : index
    %141 = vector.load %arg11[%c0_63, %c0_64, %c0_65] : memref<1x8x1024xf32, #tpu.memory_space<vmem>>, vector<1x8x1024xf32>
    %142 = vector.shape_cast %141 : vector<1x8x1024xf32> to vector<8x1024xf32>
    %143 = vector.shape_cast %140 : vector<8x1024xf32> to vector<1x8x1024xf32>
    tpu.vector_store %arg11[%c0_63, %c0_64, %c0_65], %143 {strides = array<i32>} : memref<1x8x1024xf32, #tpu.memory_space<vmem>>, vector<1x8x1024xf32>,
    return
  }
  func.func @transform_0(%arg0: i32) -> (i32, i32, i32) {
    %c0_i32 = arith.constant 0 : i32
    %c0_i32_0 = arith.constant 0 : i32
    %c0_i32_1 = arith.constant 0 : i32
    return %arg0, %c0_i32, %c0_i32_0 : i32, i32, i32
  }
  func.func @transform_1(%arg0: i32) -> (i32, i32) {
    %c0_i32 = arith.constant 0 : i32
    %c0_i32_0 = arith.constant 0 : i32
    %c0_i32_1 = arith.constant 0 : i32
    return %c0_i32, %c0_i32_0 : i32, i32
  }
  func.func @transform_2(%arg0: i32) -> (i32, i32) {
    %c0_i32 = arith.constant 0 : i32
    %c0_i32_0 = arith.constant 0 : i32
    %c0_i32_1 = arith.constant 0 : i32
    return %c0_i32, %c0_i32_0 : i32, i32
  }
  func.func @transform_3(%arg0: i32) -> (i32, i32) {
    %c0_i32 = arith.constant 0 : i32
    %c0_i32_0 = arith.constant 0 : i32
    %c0_i32_1 = arith.constant 0 : i32
    return %c0_i32, %c0_i32_0 : i32, i32
  }
  func.func @transform_4(%arg0: i32) -> (i32, i32) {
    %c0_i32 = arith.constant 0 : i32
    %c0_i32_0 = arith.constant 0 : i32
    %c0_i32_1 = arith.constant 0 : i32
    return %c0_i32, %c0_i32_0 : i32, i32
  }
  func.func @transform_5(%arg0: i32) -> (i32, i32) {
    %c0_i32 = arith.constant 0 : i32
    %c0_i32_0 = arith.constant 0 : i32
    %c0_i32_1 = arith.constant 0 : i32
    return %c0_i32, %c0_i32_0 : i32, i32
  }
  func.func @transform_6(%arg0: i32) -> (i32, i32) {
    %c0_i32 = arith.constant 0 : i32
    %c0_i32_0 = arith.constant 0 : i32
    %c0_i32_1 = arith.constant 0 : i32
    return %c0_i32, %c0_i32_0 : i32, i32
  }
  func.func @transform_7(%arg0: i32) -> (i32, i32) {
    %c0_i32 = arith.constant 0 : i32
    %c0_i32_0 = arith.constant 0 : i32
    %c0_i32_1 = arith.constant 0 : i32
    return %c0_i32, %c0_i32_0 : i32, i32
  }
  func.func @transform_8(%arg0: i32) -> (i32, i32) {
    %c0_i32 = arith.constant 0 : i32
    %c0_i32_0 = arith.constant 0 : i32
    %c0_i32_1 = arith.constant 0 : i32
    return %c0_i32, %c0_i32_0 : i32, i32
  }
  func.func @transform_9(%arg0: i32) -> (i32, i32) {
    %c0_i32 = arith.constant 0 : i32
    %c0_i32_0 = arith.constant 0 : i32
    %c0_i32_1 = arith.constant 0 : i32
    return %c0_i32, %c0_i32_0 : i32, i32
  }
  func.func @transform_10(%arg0: i32) -> (i32, i32, i32) {
    %c0_i32 = arith.constant 0 : i32
    %c0_i32_0 = arith.constant 0 : i32
    %c0_i32_1 = arith.constant 0 : i32
    return %arg0, %c0_i32, %c0_i32_0 : i32, i32, i32
  }
}

</mosaic_0001>

<llo_original>
// kernel: _lambda_.1
$region0: #{_lambda_.1}
  #allocation0 [shape = 'u32[]', space=smem, size = 0x4, offset = 0x4, fixed_abs, tag = 'smem constant byte address 0x4 - core index']
  #allocation1 [shape = 'u32[144,128]{1,0:T(1,128)}', space=vmem, size = 0x12000, scoped, tag = 'internal scratch']
  %s0 = inlined_call_operand.vmem [shape: f32[2,8,1024], index: 0, kind: input, shape index: {}]
  %s1 = inlined_call_operand.vmem [shape: f32[1,1024], index: 1, kind: input, shape index: {}]
  %s2 = inlined_call_operand.vmem [shape: f32[8,216], index: 2, kind: input, shape index: {}]
  %s3 = inlined_call_operand.vmem [shape: f32[8,1], index: 3, kind: input, shape index: {}]
  %s4 = inlined_call_operand.vmem [shape: f32[8,1], index: 4, kind: input, shape index: {}]
  %s5 = inlined_call_operand.vmem [shape: f32[8,1], index: 5, kind: input, shape index: {}]
  %s6 = inlined_call_operand.vmem [shape: f32[8,216], index: 6, kind: input, shape index: {}]
  %s7 = inlined_call_operand.vmem [shape: f32[8,1], index: 7, kind: input, shape index: {}]
  %s8 = inlined_call_operand.vmem [shape: f32[8,1], index: 8, kind: input, shape index: {}]
  %s9 = inlined_call_operand.vmem [shape: f32[8,1], index: 9, kind: input, shape index: {}]
  %s10 = inlined_call_operand.vmem [shape: f32[2,8,1024], index: 10, kind: output, shape index: {}]
  %s11 = sld [smem:[#allocation0]]
  $region73: #{_lambda_.1} parent=0
    _
  %s13 = ssub.s32 1, %s11
  %s14 = scalar_select 0, %s13, %s11
  loop: start=0, step=1, limit=4
  $region2: #{_lambda_.1} parent=0 // loop_pre_header
    _
  $region3: #{_lambda_.1} parent=0 // loop_header
    %s16 = sphi 0, %s20
    %p17 = scmp.ge.s32.totalorder %s16, 4
    %s26 = sphi 0, %s28
    %s29 = sphi 0, %s26
    %s30 = sphi 0, %s29
    %s46 = sphi 0, %s30
    %s50 = sphi 0, %s50
    %s52 = sphi 0, %s50
    %s53 = sphi 0, %s52
    %s67 = sphi 0, %s53
    %s71 = sphi 0, %s71
    %s73 = sphi 0, %s71
    %s74 = sphi 0, %s73
    %s88 = sphi 0, %s74
    %s92 = sphi 0, %s92
    %s94 = sphi 0, %s92
    %s95 = sphi 0, %s94
    %s109 = sphi 0, %s95
    %s113 = sphi 0, %s113
    %s115 = sphi 0, %s113
    %s116 = sphi 0, %s115
    %s130 = sphi 0, %s116
    %s134 = sphi 0, %s134
    %s136 = sphi 0, %s134
    %s137 = sphi 0, %s136
    %s151 = sphi 0, %s137
    %s155 = sphi 0, %s155
    %s157 = sphi 0, %s155
    %s158 = sphi 0, %s157
    %s172 = sphi 0, %s158
    %s176 = sphi 0, %s176
    %s178 = sphi 0, %s176
    %s179 = sphi 0, %s178
    %s193 = sphi 0, %s179
    %s197 = sphi 0, %s197
    %s199 = sphi 0, %s197
    %s200 = sphi 0, %s199
    %s214 = sphi 0, %s200
    %s218 = sphi 0, %s218
    %s220 = sphi 0, %s218
    %s221 = sphi 0, %s220
    %s235 = sphi 0, %s221
    %s241 = sphi 0, %s243
    %s244 = sphi 0, %s241
    %s245 = sphi 0, %s244
    %s261 = sphi 0, %s245
  $region4: #{_lambda_.1} parent=0 // loop_header_branch
    %19 = sbr.rel (%p17) target = $region8
  $region5: #{_lambda_.1} parent=0 // loop_body
    %s21 = ssub.s32 %s16, 1
    %s22 = ssub.s32 %s16, 2
    %s23 = sadd.s32 %s16, 1
    %s24 = ssub.s32 %s16, %s23
    %p25 = scmp.eq.s32.totalorder %s24, 0
    %s27 = sadd.s32 %s26, 1
    %s28 = scalar_select %p25, %s26, %s27
    %p31 = pneg %p25
    %p32 = scmp.eq.s32.totalorder %s16, 1
    %p33 = por %p31, %p32
    %p34 = scmp.ne.s32.totalorder %s26, %s29
    %p35 = scmp.eq.s32.totalorder %s16, 0
    %p36 = por %p34, %p35
    %p37 = scmp.ne.s32.totalorder %s26, %s29
    %p38 = scmp.eq.s32.totalorder %s21, 1
    %p39 = por %p37, %p38
    %p40 = scmp.ne.s32.totalorder %s29, %s30
    %p41 = scmp.eq.s32.totalorder %s21, 0
    %p42 = por %p40, %p41
    %p43 = scmp.ne.s32.totalorder %s29, %s30
    %p44 = scmp.eq.s32.totalorder %s22, 1
    %p45 = por %p43, %p44
    %p47 = scmp.ne.s32.totalorder %s30, %s46
    %p48 = scmp.eq.s32.totalorder %s22, 0
    %p49 = por %p47, %p48
    %s51 = sadd.s32 %s50, 1
    %p54 = scmp.eq.s32.totalorder %s16, 1
    %p55 = scmp.ne.s32.totalorder %s50, %s52
    %p56 = scmp.eq.s32.totalorder %s16, 0
    %p57 = por %p55, %p56
    %p58 = scmp.ne.s32.totalorder %s50, %s52
    %p59 = scmp.eq.s32.totalorder %s21, 1
    %p60 = por %p58, %p59
    %p61 = scmp.ne.s32.totalorder %s52, %s53
    %p62 = scmp.eq.s32.totalorder %s21, 0
    %p63 = por %p61, %p62
    %p64 = scmp.ne.s32.totalorder %s52, %s53
    %p65 = scmp.eq.s32.totalorder %s22, 1
    %p66 = por %p64, %p65
    %p68 = scmp.ne.s32.totalorder %s53, %s67
    %p69 = scmp.eq.s32.totalorder %s22, 0
    %p70 = por %p68, %p69
    %s72 = sadd.s32 %s71, 1
    %p75 = scmp.eq.s32.totalorder %s16, 1
    %p76 = scmp.ne.s32.totalorder %s71, %s73
    %p77 = scmp.eq.s32.totalorder %s16, 0
    %p78 = por %p76, %p77
    %p79 = scmp.ne.s32.totalorder %s71, %s73
    %p80 = scmp.eq.s32.totalorder %s21, 1
    %p81 = por %p79, %p80
    %p82 = scmp.ne.s32.totalorder %s73, %s74
    %p83 = scmp.eq.s32.totalorder %s21, 0
    %p84 = por %p82, %p83
    %p85 = scmp.ne.s32.totalorder %s73, %s74
    %p86 = scmp.eq.s32.totalorder %s22, 1
    %p87 = por %p85, %p86
    %p89 = scmp.ne.s32.totalorder %s74, %s88
    %p90 = scmp.eq.s32.totalorder %s22, 0
    %p91 = por %p89, %p90
    %s93 = sadd.s32 %s92, 1
    %p96 = scmp.eq.s32.totalorder %s16, 1
    %p97 = scmp.ne.s32.totalorder %s92, %s94
    %p98 = scmp.eq.s32.totalorder %s16, 0
    %p99 = por %p97, %p98
    %p100 = scmp.ne.s32.totalorder %s92, %s94
    %p101 = scmp.eq.s32.totalorder %s21, 1
    %p102 = por %p100, %p101
    %p103 = scmp.ne.s32.totalorder %s94, %s95
    %p104 = scmp.eq.s32.totalorder %s21, 0
    %p105 = por %p103, %p104
    %p106 = scmp.ne.s32.totalorder %s94, %s95
    %p107 = scmp.eq.s32.totalorder %s22, 1
    %p108 = por %p106, %p107
    %p110 = scmp.ne.s32.totalorder %s95, %s109
    %p111 = scmp.eq.s32.totalorder %s22, 0
    %p112 = por %p110, %p111
    %s114 = sadd.s32 %s113, 1
    %p117 = scmp.eq.s32.totalorder %s16, 1
    %p118 = scmp.ne.s32.totalorder %s113, %s115
    %p119 = scmp.eq.s32.totalorder %s16, 0
    %p120 = por %p118, %p119
    %p121 = scmp.ne.s32.totalorder %s113, %s115
    %p122 = scmp.eq.s32.totalorder %s21, 1
    %p123 = por %p121, %p122
    %p124 = scmp.ne.s32.totalorder %s115, %s116
    %p125 = scmp.eq.s32.totalorder %s21, 0
    %p126 = por %p124, %p125
    %p127 = scmp.ne.s32.totalorder %s115, %s116
    %p128 = scmp.eq.s32.totalorder %s22, 1
    %p129 = por %p127, %p128
    %p131 = scmp.ne.s32.totalorder %s116, %s130
    %p132 = scmp.eq.s32.totalorder %s22, 0
    %p133 = por %p131, %p132
    %s135 = sadd.s32 %s134, 1
    %p138 = scmp.eq.s32.totalorder %s16, 1
    %p139 = scmp.ne.s32.totalorder %s134, %s136
    %p140 = scmp.eq.s32.totalorder %s16, 0
    %p141 = por %p139, %p140
    %p142 = scmp.ne.s32.totalorder %s134, %s136
    %p143 = scmp.eq.s32.totalorder %s21, 1
    %p144 = por %p142, %p143
    %p145 = scmp.ne.s32.totalorder %s136, %s137
    %p146 = scmp.eq.s32.totalorder %s21, 0
    %p147 = por %p145, %p146
    %p148 = scmp.ne.s32.totalorder %s136, %s137
    %p149 = scmp.eq.s32.totalorder %s22, 1
    %p150 = por %p148, %p149
    %p152 = scmp.ne.s32.totalorder %s137, %s151
    %p153 = scmp.eq.s32.totalorder %s22, 0
    %p154 = por %p152, %p153
    %s156 = sadd.s32 %s155, 1
    %p159 = scmp.eq.s32.totalorder %s16, 1
    %p160 = scmp.ne.s32.totalorder %s155, %s157
    %p161 = scmp.eq.s32.totalorder %s16, 0
    %p162 = por %p160, %p161
    %p163 = scmp.ne.s32.totalorder %s155, %s157
    %p164 = scmp.eq.s32.totalorder %s21, 1
    %p165 = por %p163, %p164
    %p166 = scmp.ne.s32.totalorder %s157, %s158
    %p167 = scmp.eq.s32.totalorder %s21, 0
    %p168 = por %p166, %p167
    %p169 = scmp.ne.s32.totalorder %s157, %s158
    %p170 = scmp.eq.s32.totalorder %s22, 1
    %p171 = por %p169, %p170
    %p173 = scmp.ne.s32.totalorder %s158, %s172
    %p174 = scmp.eq.s32.totalorder %s22, 0
    %p175 = por %p173, %p174
    %s177 = sadd.s32 %s176, 1
    %p180 = scmp.eq.s32.totalorder %s16, 1
    %p181 = scmp.ne.s32.totalorder %s176, %s178
    %p182 = scmp.eq.s32.totalorder %s16, 0
    %p183 = por %p181, %p182
    %p184 = scmp.ne.s32.totalorder %s176, %s178
    %p185 = scmp.eq.s32.totalorder %s21, 1
    %p186 = por %p184, %p185
    %p187 = scmp.ne.s32.totalorder %s178, %s179
    %p188 = scmp.eq.s32.totalorder %s21, 0
    %p189 = por %p187, %p188
    %p190 = scmp.ne.s32.totalorder %s178, %s179
    %p191 = scmp.eq.s32.totalorder %s22, 1
    %p192 = por %p190, %p191
    %p194 = scmp.ne.s32.totalorder %s179, %s193
    %p195 = scmp.eq.s32.totalorder %s22, 0
    %p196 = por %p194, %p195
    %s198 = sadd.s32 %s197, 1
    %p201 = scmp.eq.s32.totalorder %s16, 1
    %p202 = scmp.ne.s32.totalorder %s197, %s199
    %p203 = scmp.eq.s32.totalorder %s16, 0
    %p204 = por %p202, %p203
    %p205 = scmp.ne.s32.totalorder %s197, %s199
    %p206 = scmp.eq.s32.totalorder %s21, 1
    %p207 = por %p205, %p206
    %p208 = scmp.ne.s32.totalorder %s199, %s200
    %p209 = scmp.eq.s32.totalorder %s21, 0
    %p210 = por %p208, %p209
    %p211 = scmp.ne.s32.totalorder %s199, %s200
    %p212 = scmp.eq.s32.totalorder %s22, 1
    %p213 = por %p211, %p212
    %p215 = scmp.ne.s32.totalorder %s200, %s214
    %p216 = scmp.eq.s32.totalorder %s22, 0
    %p217 = por %p215, %p216
    %s219 = sadd.s32 %s218, 1
    %p222 = scmp.eq.s32.totalorder %s16, 1
    %p223 = scmp.ne.s32.totalorder %s218, %s220
    %p224 = scmp.eq.s32.totalorder %s16, 0
    %p225 = por %p223, %p224
    %p226 = scmp.ne.s32.totalorder %s218, %s220
    %p227 = scmp.eq.s32.totalorder %s21, 1
    %p228 = por %p226, %p227
    %p229 = scmp.ne.s32.totalorder %s220, %s221
    %p230 = scmp.eq.s32.totalorder %s21, 0
    %p231 = por %p229, %p230
    %p232 = scmp.ne.s32.totalorder %s220, %s221
    %p233 = scmp.eq.s32.totalorder %s22, 1
    %p234 = por %p232, %p233
    %p236 = scmp.ne.s32.totalorder %s221, %s235
    %p237 = scmp.eq.s32.totalorder %s22, 0
    %p238 = por %p236, %p237
    %s239 = ssub.s32 %s16, %s23
    %p240 = scmp.eq.s32.totalorder %s239, 0
    %s242 = sadd.s32 %s241, 1
    %s243 = scalar_select %p240, %s241, %s242
    %p246 = pneg %p240
    %p247 = scmp.eq.s32.totalorder %s16, 1
    %p248 = por %p246, %p247
    %p249 = scmp.ne.s32.totalorder %s241, %s244
    %p250 = scmp.eq.s32.totalorder %s16, 0
    %p251 = por %p249, %p250
    %p252 = scmp.ne.s32.totalorder %s241, %s244
    %p253 = scmp.eq.s32.totalorder %s21, 1
    %p254 = por %p252, %p253
    %p255 = scmp.ne.s32.totalorder %s244, %s245
    %p256 = scmp.eq.s32.totalorder %s21, 0
    %p257 = por %p255, %p256
    %p258 = scmp.ne.s32.totalorder %s244, %s245
    %p259 = scmp.eq.s32.totalorder %s22, 1
    %p260 = por %p258, %p259
    %p262 = scmp.ne.s32.totalorder %s245, %s261
    %p263 = scmp.eq.s32.totalorder %s22, 0
    %p264 = por %p262, %p263
    %p265 = scmp.le.s32.totalorder 1, %s16
    %p266 = scmp.lt.s32.totalorder %s16, 3
    %p267 = pnand %p265, %p266
    %p268 = pneg %p267
    // Predicated region
    $region9: #{_lambda_.1} parent=5 // pred_check
      _
    $region10: #{_lambda_.1} parent=5 // pred_check_branch
      %270 = sbr.rel (%p267) target = $region12
    $region11: #{_lambda_.1} parent=5 // pred_region
      %s271 = ssub.s32 %s16, 1
      // Predicated region
      $region13: #{_lambda_.1} parent=11 // pred_check
        %p272 = pneg %p63
      $region14: #{_lambda_.1} parent=11 // pred_check_branch
        %274 = sbr.rel (%p272) target = $region16
      $region15: #{_lambda_.1} parent=11 // pred_region
        _
      $region16: #{_lambda_.1} parent=11 // pred_fallthru
        _
      // Predicated region
      $region17: #{_lambda_.1} parent=11 // pred_check
        %p275 = pneg %p84
      $region18: #{_lambda_.1} parent=11 // pred_check_branch
        %277 = sbr.rel (%p275) target = $region20
      $region19: #{_lambda_.1} parent=11 // pred_region
        _
      $region20: #{_lambda_.1} parent=11 // pred_fallthru
        _
      // Predicated region
      $region21: #{_lambda_.1} parent=11 // pred_check
        %p278 = pneg %p105
      $region22: #{_lambda_.1} parent=11 // pred_check_branch
        %280 = sbr.rel (%p278) target = $region24
      $region23: #{_lambda_.1} parent=11 // pred_region
        _
      $region24: #{_lambda_.1} parent=11 // pred_fallthru
        _
      // Predicated region
      $region25: #{_lambda_.1} parent=11 // pred_check
        %p281 = pneg %p126
      $region26: #{_lambda_.1} parent=11 // pred_check_branch
        %283 = sbr.rel (%p281) target = $region28
      $region27: #{_lambda_.1} parent=11 // pred_region
        _
      $region28: #{_lambda_.1} parent=11 // pred_fallthru
        _
      // Predicated region
      $region29: #{_lambda_.1} parent=11 // pred_check
        %p284 = pneg %p147
      $region30: #{_lambda_.1} parent=11 // pred_check_branch
        %286 = sbr.rel (%p284) target = $region32
      $region31: #{_lambda_.1} parent=11 // pred_region
        _
      $region32: #{_lambda_.1} parent=11 // pred_fallthru
        _
      // Predicated region
      $region33: #{_lambda_.1} parent=11 // pred_check
        %p287 = pneg %p168
      $region34: #{_lambda_.1} parent=11 // pred_check_branch
        %289 = sbr.rel (%p287) target = $region36
      $region35: #{_lambda_.1} parent=11 // pred_region
        _
      $region36: #{_lambda_.1} parent=11 // pred_fallthru
        _
      // Predicated region
      $region37: #{_lambda_.1} parent=11 // pred_check
        %p290 = pneg %p189
      $region38: #{_lambda_.1} parent=11 // pred_check_branch
        %292 = sbr.rel (%p290) target = $region40
      $region39: #{_lambda_.1} parent=11 // pred_region
        _
      $region40: #{_lambda_.1} parent=11 // pred_fallthru
        _
      // Predicated region
      $region41: #{_lambda_.1} parent=11 // pred_check
        %p293 = pneg %p210
      $region42: #{_lambda_.1} parent=11 // pred_check_branch
        %295 = sbr.rel (%p293) target = $region44
      $region43: #{_lambda_.1} parent=11 // pred_region
        _
      $region44: #{_lambda_.1} parent=11 // pred_fallthru
        _
      // Predicated region
      $region45: #{_lambda_.1} parent=11 // pred_check
        %p296 = pneg %p231
      $region46: #{_lambda_.1} parent=11 // pred_check_branch
        %298 = sbr.rel (%p296) target = $region48
      $region47: #{_lambda_.1} parent=11 // pred_region
        _
      $region48: #{_lambda_.1} parent=11 // pred_fallthru
        _
    $region12: #{_lambda_.1} parent=5 // pred_fallthru
      _
    %p299 = scmp.lt.s32.totalorder %s16, 2
    // Predicated region
    $region49: #{_lambda_.1} parent=5 // pred_check
      %p300 = pneg %p299
    $region50: #{_lambda_.1} parent=5 // pred_check_branch
      %302 = sbr.rel (%p300) target = $region52
    $region51: #{_lambda_.1} parent=5 // pred_region
      // Predicated region
      $region53: #{_lambda_.1} parent=51 // pred_check
        %p303 = pneg %p36
      $region54: #{_lambda_.1} parent=51 // pred_check_branch
        %305 = sbr.rel (%p303) target = $region56
      $region55: #{_lambda_.1} parent=51 // pred_region
        %p306 = scmp.lt.s32.totalorder %s16, 1
        %s307 = scalar_select %p306, %s16, 1
        %s308 = smul.addr %s307, 8
        %s309 = smul.addr %s308, 8
        %s310 = scalar_lea.vmem %s0, %s309
      $region56: #{_lambda_.1} parent=51 // pred_fallthru
        _
    $region52: #{_lambda_.1} parent=5 // pred_fallthru
      _
    %p311 = scmp.le.s32.totalorder 1, %s16
    %p312 = scmp.lt.s32.totalorder %s16, 3
    %p313 = pnand %p311, %p312
    %p314 = pneg %p313
    // Predicated region
    $region57: #{_lambda_.1} parent=5 // pred_check
      _
    $region58: #{_lambda_.1} parent=5 // pred_check_branch
      %316 = sbr.rel (%p313) target = $region60
    $region59: #{_lambda_.1} parent=5 // pred_region
      %s317 = ssub.s32 %s16, 1
      %p318 = scmp.lt.s32.totalorder %s21, 1
      %s319 = scalar_select %p318, %s21, 1
      %s320 = smul.addr %s319, 8
      %s321 = smul.addr %s320, 8
      %s322 = scalar_lea.vmem %s0, %s321
      %p323 = pneg %p42
      %p324 = pneg %p39
      %p325 = pneg %p63
      %p326 = pneg %p60
      %p327 = pneg %p84
      %p328 = pneg %p81
      %p329 = pneg %p105
      %p330 = pneg %p102
      %p331 = pneg %p126
      %p332 = pneg %p123
      %p333 = pneg %p147
      %p334 = pneg %p144
      %p335 = pneg %p168
      %p336 = pneg %p165
      %p337 = pneg %p189
      %p338 = pneg %p186
      %p339 = pneg %p210
      %p340 = pneg %p207
      %p341 = pneg %p231
      %p342 = pneg %p228
      %p343 = pneg %p257
      %p344 = pneg %p254
      %p345 = scmp.lt.s32.totalorder %s21, 1
      %s346 = scalar_select %p345, %s21, 1
      %s347 = smul.addr %s346, 8
      %s348 = smul.addr %s347, 8
      %s349 = scalar_lea.vmem %s10, %s348
      %p350 = scmp.lt.s32.totalorder %s21, 1
      %s351 = scalar_select %p350, %s21, 1
      %s352 = smul.addr %s351, 8
      %s353 = smul.addr %s352, 8
      %s354 = scalar_lea.vmem %s0, %s353
      %p355 = scmp.lt.s32.totalorder %s21, 1
      %s356 = scalar_select %p355, %s21, 1
      %s357 = smul.addr %s356, 8
      %s358 = smul.addr %s357, 8
      %s359 = scalar_lea.vmem %s10, %s358
      %v360 = vld [vmem:[%s1] sm:$0xff]
      %v361 = vld [vmem:[%s354] sm:$0xff]
      %v362 = vld [vmem:[%s354 + $0x8] sm:$0xff]
      %v363 = vld [vmem:[%s354 + $0x10] sm:$0xff]
      %v364 = vld [vmem:[%s354 + $0x18] sm:$0xff]
      %v365 = vld [vmem:[%s354 + $0x20] sm:$0xff]
      %v366 = vld [vmem:[%s354 + $0x28] sm:$0xff]
      %v367 = vld [vmem:[%s354 + $0x30] sm:$0xff]
      %v368 = vld [vmem:[%s354 + $0x38] sm:$0xff]
      %369 = vrot.lane.b32.xlu0 %v361, 111
      %v370 = vpop.permute.xlu0 %369
      %371 = vrot.lane.b32.xlu0 %v362, 111
      %v372 = vpop.permute.xlu0 %371
      %373 = vrot.lane.b32.xlu0 %v363, 111
      %v374 = vpop.permute.xlu0 %373
      %375 = vrot.lane.b32.xlu0 %v364, 111
      %v376 = vpop.permute.xlu0 %375
      %377 = vrot.lane.b32.xlu0 %v365, 111
      %v378 = vpop.permute.xlu0 %377
      %379 = vrot.lane.b32.xlu0 %v366, 111
      %v380 = vpop.permute.xlu0 %379
      %381 = vrot.lane.b32.xlu0 %v367, 111
      %v382 = vpop.permute.xlu0 %381
      %383 = vrot.lane.b32.xlu0 %v368, 111
      %v384 = vpop.permute.xlu0 %383
      %v385 = vlaneseq
      %v386 = vand.u32 %v385, 127
      %vm387 = vcmp.lt.s32.totalorder %v386, 111
      %v388 = vsel %vm387, %v382, %v384
      %v389 = vsel %vm387, %v380, %v382
      %v390 = vsel %vm387, %v378, %v380
      %v391 = vsel %vm387, %v376, %v378
      %v392 = vsel %vm387, %v374, %v376
      %v393 = vsel %vm387, %v372, %v374
      %v394 = vsel %vm387, %v370, %v372
      %v395 = vsel %vm387, %v384, %v370
      %396 = vrot.lane.b32.xlu0 %v361, 110
      %v397 = vpop.permute.xlu0 %396
      %398 = vrot.lane.b32.xlu0 %v362, 110
      %v399 = vpop.permute.xlu0 %398
      %400 = vrot.lane.b32.xlu0 %v363, 110
      %v401 = vpop.permute.xlu0 %400
      %402 = vrot.lane.b32.xlu0 %v364, 110
      %v403 = vpop.permute.xlu0 %402
      %404 = vrot.lane.b32.xlu0 %v365, 110
      %v405 = vpop.permute.xlu0 %404
      %406 = vrot.lane.b32.xlu0 %v366, 110
      %v407 = vpop.permute.xlu0 %406
      %408 = vrot.lane.b32.xlu0 %v367, 110
      %v409 = vpop.permute.xlu0 %408
      %410 = vrot.lane.b32.xlu0 %v368, 110
      %v411 = vpop.permute.xlu0 %410
      %vm412 = vcmp.lt.s32.totalorder %v386, 110
      %v413 = vsel %vm412, %v409, %v411
      %v414 = vsel %vm412, %v407, %v409
      %v415 = vsel %vm412, %v405, %v407
      %v416 = vsel %vm412, %v403, %v405
      %v417 = vsel %vm412, %v401, %v403
      %v418 = vsel %vm412, %v399, %v401
      %v419 = vsel %vm412, %v397, %v399
      %v420 = vsel %vm412, %v411, %v397
      %421 = vrot.lane.b32.xlu0 %v361, 109
      %v422 = vpop.permute.xlu0 %421
      %423 = vrot.lane.b32.xlu0 %v362, 109
      %v424 = vpop.permute.xlu0 %423
      %425 = vrot.lane.b32.xlu0 %v363, 109
      %v426 = vpop.permute.xlu0 %425
      %427 = vrot.lane.b32.xlu0 %v364, 109
      %v428 = vpop.permute.xlu0 %427
      %429 = vrot.lane.b32.xlu0 %v365, 109
      %v430 = vpop.permute.xlu0 %429
      %431 = vrot.lane.b32.xlu0 %v366, 109
      %v432 = vpop.permute.xlu0 %431
      %433 = vrot.lane.b32.xlu0 %v367, 109
      %v434 = vpop.permute.xlu0 %433
      %435 = vrot.lane.b32.xlu0 %v368, 109
      %v436 = vpop.permute.xlu0 %435
      %vm437 = vcmp.lt.s32.totalorder %v386, 109
      %v438 = vsel %vm437, %v434, %v436
      %v439 = vsel %vm437, %v432, %v434
      %v440 = vsel %vm437, %v430, %v432
      %v441 = vsel %vm437, %v428, %v430
      %v442 = vsel %vm437, %v426, %v428
      %v443 = vsel %vm437, %v424, %v426
      %v444 = vsel %vm437, %v422, %v424
      %v445 = vsel %vm437, %v436, %v422
      %446 = vrot.lane.b32.xlu0 %v361, 101
      %v447 = vpop.permute.xlu0 %446
      %448 = vrot.lane.b32.xlu0 %v362, 101
      %v449 = vpop.permute.xlu0 %448
      %450 = vrot.lane.b32.xlu0 %v363, 101
      %v451 = vpop.permute.xlu0 %450
      %452 = vrot.lane.b32.xlu0 %v364, 101
      %v453 = vpop.permute.xlu0 %452
      %454 = vrot.lane.b32.xlu0 %v365, 101
      %v455 = vpop.permute.xlu0 %454
      %456 = vrot.lane.b32.xlu0 %v366, 101
      %v457 = vpop.permute.xlu0 %456
      %458 = vrot.lane.b32.xlu0 %v367, 101
      %v459 = vpop.permute.xlu0 %458
      %460 = vrot.lane.b32.xlu0 %v368, 101
      %v461 = vpop.permute.xlu0 %460
      %vm462 = vcmp.lt.s32.totalorder %v386, 101
      %v463 = vsel %vm462, %v459, %v461
      %v464 = vsel %vm462, %v457, %v459
      %v465 = vsel %vm462, %v455, %v457
      %v466 = vsel %vm462, %v453, %v455
      %v467 = vsel %vm462, %v451, %v453
      %v468 = vsel %vm462, %v449, %v451
      %v469 = vsel %vm462, %v447, %v449
      %v470 = vsel %vm462, %v461, %v447
      %471 = vrot.lane.b32.xlu0 %v361, 100
      %v472 = vpop.permute.xlu0 %471
      %473 = vrot.lane.b32.xlu0 %v362, 100
      %v474 = vpop.permute.xlu0 %473
      %475 = vrot.lane.b32.xlu0 %v363, 100
      %v476 = vpop.permute.xlu0 %475
      %477 = vrot.lane.b32.xlu0 %v364, 100
      %v478 = vpop.permute.xlu0 %477
      %479 = vrot.lane.b32.xlu0 %v365, 100
      %v480 = vpop.permute.xlu0 %479
      %481 = vrot.lane.b32.xlu0 %v366, 100
      %v482 = vpop.permute.xlu0 %481
      %483 = vrot.lane.b32.xlu0 %v367, 100
      %v484 = vpop.permute.xlu0 %483
      %485 = vrot.lane.b32.xlu0 %v368, 100
      %v486 = vpop.permute.xlu0 %485
      %vm487 = vcmp.lt.s32.totalorder %v386, 100
      %v488 = vsel %vm487, %v484, %v486
      %v489 = vsel %vm487, %v482, %v484
      %v490 = vsel %vm487, %v480, %v482
      %v491 = vsel %vm487, %v478, %v480
      %v492 = vsel %vm487, %v476, %v478
      %v493 = vsel %vm487, %v474, %v476
      %v494 = vsel %vm487, %v472, %v474
      %v495 = vsel %vm487, %v486, %v472
      %496 = vrot.lane.b32.xlu0 %v361, 99
      %v497 = vpop.permute.xlu0 %496
      %498 = vrot.lane.b32.xlu0 %v362, 99
      %v499 = vpop.permute.xlu0 %498
      %500 = vrot.lane.b32.xlu0 %v363, 99
      %v501 = vpop.permute.xlu0 %500
      %502 = vrot.lane.b32.xlu0 %v364, 99
      %v503 = vpop.permute.xlu0 %502
      %504 = vrot.lane.b32.xlu0 %v365, 99
      %v505 = vpop.permute.xlu0 %504
      %506 = vrot.lane.b32.xlu0 %v366, 99
      %v507 = vpop.permute.xlu0 %506
      %508 = vrot.lane.b32.xlu0 %v367, 99
      %v509 = vpop.permute.xlu0 %508
      %510 = vrot.lane.b32.xlu0 %v368, 99
      %v511 = vpop.permute.xlu0 %510
      %vm512 = vcmp.lt.s32.totalorder %v386, 99
      %v513 = vsel %vm512, %v509, %v511
      %v514 = vsel %vm512, %v507, %v509
      %v515 = vsel %vm512, %v505, %v507
      %v516 = vsel %vm512, %v503, %v505
      %v517 = vsel %vm512, %v501, %v503
      %v518 = vsel %vm512, %v499, %v501
      %v519 = vsel %vm512, %v497, %v499
      %v520 = vsel %vm512, %v511, %v497
      %521 = vrot.lane.b32.xlu0 %v361, 91
      %v522 = vpop.permute.xlu0 %521
      %523 = vrot.lane.b32.xlu0 %v362, 91
      %v524 = vpop.permute.xlu0 %523
      %525 = vrot.lane.b32.xlu0 %v363, 91
      %v526 = vpop.permute.xlu0 %525
      %527 = vrot.lane.b32.xlu0 %v364, 91
      %v528 = vpop.permute.xlu0 %527
      %529 = vrot.lane.b32.xlu0 %v365, 91
      %v530 = vpop.permute.xlu0 %529
      %531 = vrot.lane.b32.xlu0 %v366, 91
      %v532 = vpop.permute.xlu0 %531
      %533 = vrot.lane.b32.xlu0 %v367, 91
      %v534 = vpop.permute.xlu0 %533
      %535 = vrot.lane.b32.xlu0 %v368, 91
      %v536 = vpop.permute.xlu0 %535
      %vm537 = vcmp.lt.s32.totalorder %v386, 91
      %v538 = vsel %vm537, %v534, %v536
      %v539 = vsel %vm537, %v532, %v534
      %v540 = vsel %vm537, %v530, %v532
      %v541 = vsel %vm537, %v528, %v530
      %v542 = vsel %vm537, %v526, %v528
      %v543 = vsel %vm537, %v524, %v526
      %v544 = vsel %vm537, %v522, %v524
      %v545 = vsel %vm537, %v536, %v522
      %546 = vrot.lane.b32.xlu0 %v361, 90
      %v547 = vpop.permute.xlu0 %546
      %548 = vrot.lane.b32.xlu0 %v362, 90
      %v549 = vpop.permute.xlu0 %548
      %550 = vrot.lane.b32.xlu0 %v363, 90
      %v551 = vpop.permute.xlu0 %550
      %552 = vrot.lane.b32.xlu0 %v364, 90
      %v553 = vpop.permute.xlu0 %552
      %554 = vrot.lane.b32.xlu0 %v365, 90
      %v555 = vpop.permute.xlu0 %554
      %556 = vrot.lane.b32.xlu0 %v366, 90
      %v557 = vpop.permute.xlu0 %556
      %558 = vrot.lane.b32.xlu0 %v367, 90
      %v559 = vpop.permute.xlu0 %558
      %560 = vrot.lane.b32.xlu0 %v368, 90
      %v561 = vpop.permute.xlu0 %560
      %vm562 = vcmp.lt.s32.totalorder %v386, 90
      %v563 = vsel %vm562, %v559, %v561
      %v564 = vsel %vm562, %v557, %v559
      %v565 = vsel %vm562, %v555, %v557
      %v566 = vsel %vm562, %v553, %v555
      %v567 = vsel %vm562, %v551, %v553
      %v568 = vsel %vm562, %v549, %v551
      %v569 = vsel %vm562, %v547, %v549
      %v570 = vsel %vm562, %v561, %v547
      %571 = vrot.lane.b32.xlu0 %v361, 89
      %v572 = vpop.permute.xlu0 %571
      %573 = vrot.lane.b32.xlu0 %v362, 89
      %v574 = vpop.permute.xlu0 %573
      %575 = vrot.lane.b32.xlu0 %v363, 89
      %v576 = vpop.permute.xlu0 %575
      %577 = vrot.lane.b32.xlu0 %v364, 89
      %v578 = vpop.permute.xlu0 %577
      %579 = vrot.lane.b32.xlu0 %v365, 89
      %v580 = vpop.permute.xlu0 %579
      %581 = vrot.lane.b32.xlu0 %v366, 89
      %v582 = vpop.permute.xlu0 %581
      %583 = vrot.lane.b32.xlu0 %v367, 89
      %v584 = vpop.permute.xlu0 %583
      %585 = vrot.lane.b32.xlu0 %v368, 89
      %v586 = vpop.permute.xlu0 %585
      %vm587 = vcmp.lt.s32.totalorder %v386, 89
      %v588 = vsel %vm587, %v584, %v586
      %v589 = vsel %vm587, %v582, %v584
      %v590 = vsel %vm587, %v580, %v582
      %v591 = vsel %vm587, %v578, %v580
      %v592 = vsel %vm587, %v576, %v578
      %v593 = vsel %vm587, %v574, %v576
      %v594 = vsel %vm587, %v572, %v574
      %v595 = vsel %vm587, %v586, %v572
      %596 = vrot.lane.b32.xlu0 %v361, 11
      %v597 = vpop.permute.xlu0 %596
      %598 = vrot.lane.b32.xlu0 %v362, 11
      %v599 = vpop.permute.xlu0 %598
      %600 = vrot.lane.b32.xlu0 %v363, 11
      %v601 = vpop.permute.xlu0 %600
      %602 = vrot.lane.b32.xlu0 %v364, 11
      %v603 = vpop.permute.xlu0 %602
      %604 = vrot.lane.b32.xlu0 %v365, 11
      %v605 = vpop.permute.xlu0 %604
      %606 = vrot.lane.b32.xlu0 %v366, 11
      %v607 = vpop.permute.xlu0 %606
      %608 = vrot.lane.b32.xlu0 %v367, 11
      %v609 = vpop.permute.xlu0 %608
      %610 = vrot.lane.b32.xlu0 %v368, 11
      %v611 = vpop.permute.xlu0 %610
      %vm612 = vcmp.lt.s32.totalorder %v386, 11
      %v613 = vsel %vm612, %v609, %v611
      %v614 = vsel %vm612, %v607, %v609
      %v615 = vsel %vm612, %v605, %v607
      %v616 = vsel %vm612, %v603, %v605
      %v617 = vsel %vm612, %v601, %v603
      %v618 = vsel %vm612, %v599, %v601
      %v619 = vsel %vm612, %v597, %v599
      %v620 = vsel %vm612, %v611, %v597
      %621 = vrot.lane.b32.xlu0 %v361, 10
      %v622 = vpop.permute.xlu0 %621
      %623 = vrot.lane.b32.xlu0 %v362, 10
      %v624 = vpop.permute.xlu0 %623
      %625 = vrot.lane.b32.xlu0 %v363, 10
      %v626 = vpop.permute.xlu0 %625
      %627 = vrot.lane.b32.xlu0 %v364, 10
      %v628 = vpop.permute.xlu0 %627
      %629 = vrot.lane.b32.xlu0 %v365, 10
      %v630 = vpop.permute.xlu0 %629
      %631 = vrot.lane.b32.xlu0 %v366, 10
      %v632 = vpop.permute.xlu0 %631
      %633 = vrot.lane.b32.xlu0 %v367, 10
      %v634 = vpop.permute.xlu0 %633
      %635 = vrot.lane.b32.xlu0 %v368, 10
      %v636 = vpop.permute.xlu0 %635
      %vm637 = vcmp.lt.s32.totalorder %v386, 10
      %v638 = vsel %vm637, %v634, %v636
      %v639 = vsel %vm637, %v632, %v634
      %v640 = vsel %vm637, %v630, %v632
      %v641 = vsel %vm637, %v628, %v630
      %v642 = vsel %vm637, %v626, %v628
      %v643 = vsel %vm637, %v624, %v626
      %v644 = vsel %vm637, %v622, %v624
      %v645 = vsel %vm637, %v636, %v622
      %646 = vrot.lane.b32.xlu0 %v361, 9
      %v647 = vpop.permute.xlu0 %646
      %648 = vrot.lane.b32.xlu0 %v362, 9
      %v649 = vpop.permute.xlu0 %648
      %650 = vrot.lane.b32.xlu0 %v363, 9
      %v651 = vpop.permute.xlu0 %650
      %652 = vrot.lane.b32.xlu0 %v364, 9
      %v653 = vpop.permute.xlu0 %652
      %654 = vrot.lane.b32.xlu0 %v365, 9
      %v655 = vpop.permute.xlu0 %654
      %656 = vrot.lane.b32.xlu0 %v366, 9
      %v657 = vpop.permute.xlu0 %656
      %658 = vrot.lane.b32.xlu0 %v367, 9
      %v659 = vpop.permute.xlu0 %658
      %660 = vrot.lane.b32.xlu0 %v368, 9
      %v661 = vpop.permute.xlu0 %660
      %vm662 = vcmp.lt.s32.totalorder %v386, 9
      %v663 = vsel %vm662, %v659, %v661
      %v664 = vsel %vm662, %v657, %v659
      %v665 = vsel %vm662, %v655, %v657
      %v666 = vsel %vm662, %v653, %v655
      %v667 = vsel %vm662, %v651, %v653
      %v668 = vsel %vm662, %v649, %v651
      %v669 = vsel %vm662, %v647, %v649
      %v670 = vsel %vm662, %v661, %v647
      %671 = vrot.lane.b32.xlu0 %v361, 1
      %v672 = vpop.permute.xlu0 %671
      %673 = vrot.lane.b32.xlu0 %v362, 1
      %v674 = vpop.permute.xlu0 %673
      %675 = vrot.lane.b32.xlu0 %v363, 1
      %v676 = vpop.permute.xlu0 %675
      %677 = vrot.lane.b32.xlu0 %v364, 1
      %v678 = vpop.permute.xlu0 %677
      %679 = vrot.lane.b32.xlu0 %v365, 1
      %v680 = vpop.permute.xlu0 %679
      %681 = vrot.lane.b32.xlu0 %v366, 1
      %v682 = vpop.permute.xlu0 %681
      %683 = vrot.lane.b32.xlu0 %v367, 1
      %v684 = vpop.permute.xlu0 %683
      %685 = vrot.lane.b32.xlu0 %v368, 1
      %v686 = vpop.permute.xlu0 %685
      %vm687 = vcmp.lt.s32.totalorder %v386, 1
      %v688 = vsel %vm687, %v684, %v686
      %v689 = vsel %vm687, %v682, %v684
      %v690 = vsel %vm687, %v680, %v682
      %v691 = vsel %vm687, %v678, %v680
      %v692 = vsel %vm687, %v676, %v678
      %v693 = vsel %vm687, %v674, %v676
      %v694 = vsel %vm687, %v672, %v674
      %v695 = vsel %vm687, %v686, %v672
      %696 = vrot.lane.b32.xlu0 %v361, 127
      %v697 = vpop.permute.xlu0 %696
      %698 = vrot.lane.b32.xlu0 %v362, 127
      %v699 = vpop.permute.xlu0 %698
      %700 = vrot.lane.b32.xlu0 %v363, 127
      %v701 = vpop.permute.xlu0 %700
      %702 = vrot.lane.b32.xlu0 %v364, 127
      %v703 = vpop.permute.xlu0 %702
      %704 = vrot.lane.b32.xlu0 %v365, 127
      %v705 = vpop.permute.xlu0 %704
      %706 = vrot.lane.b32.xlu0 %v366, 127
      %v707 = vpop.permute.xlu0 %706
      %708 = vrot.lane.b32.xlu0 %v367, 127
      %v709 = vpop.permute.xlu0 %708
      %710 = vrot.lane.b32.xlu0 %v368, 127
      %v711 = vpop.permute.xlu0 %710
      %vm712 = vcmp.lt.s32.totalorder %v386, 127
      %v713 = vsel %vm712, %v709, %v711
      %v714 = vsel %vm712, %v707, %v709
      %v715 = vsel %vm712, %v705, %v707
      %v716 = vsel %vm712, %v703, %v705
      %v717 = vsel %vm712, %v701, %v703
      %v718 = vsel %vm712, %v699, %v701
      %v719 = vsel %vm712, %v697, %v699
      %v720 = vsel %vm712, %v711, %v697
      %721 = vrot.lane.b32.xlu0 %v361, 119
      %v722 = vpop.permute.xlu0 %721
      %723 = vrot.lane.b32.xlu0 %v362, 119
      %v724 = vpop.permute.xlu0 %723
      %725 = vrot.lane.b32.xlu0 %v363, 119
      %v726 = vpop.permute.xlu0 %725
      %727 = vrot.lane.b32.xlu0 %v364, 119
      %v728 = vpop.permute.xlu0 %727
      %729 = vrot.lane.b32.xlu0 %v365, 119
      %v730 = vpop.permute.xlu0 %729
      %731 = vrot.lane.b32.xlu0 %v366, 119
      %v732 = vpop.permute.xlu0 %731
      %733 = vrot.lane.b32.xlu0 %v367, 119
      %v734 = vpop.permute.xlu0 %733
      %735 = vrot.lane.b32.xlu0 %v368, 119
      %v736 = vpop.permute.xlu0 %735
      %vm737 = vcmp.lt.s32.totalorder %v386, 119
      %v738 = vsel %vm737, %v734, %v736
      %v739 = vsel %vm737, %v732, %v734
      %v740 = vsel %vm737, %v730, %v732
      %v741 = vsel %vm737, %v728, %v730
      %v742 = vsel %vm737, %v726, %v728
      %v743 = vsel %vm737, %v724, %v726
      %v744 = vsel %vm737, %v722, %v724
      %v745 = vsel %vm737, %v736, %v722
      %746 = vrot.lane.b32.xlu0 %v361, 118
      %v747 = vpop.permute.xlu0 %746
      %748 = vrot.lane.b32.xlu0 %v362, 118
      %v749 = vpop.permute.xlu0 %748
      %750 = vrot.lane.b32.xlu0 %v363, 118
      %v751 = vpop.permute.xlu0 %750
      %752 = vrot.lane.b32.xlu0 %v364, 118
      %v753 = vpop.permute.xlu0 %752
      %754 = vrot.lane.b32.xlu0 %v365, 118
      %v755 = vpop.permute.xlu0 %754
      %756 = vrot.lane.b32.xlu0 %v366, 118
      %v757 = vpop.permute.xlu0 %756
      %758 = vrot.lane.b32.xlu0 %v367, 118
      %v759 = vpop.permute.xlu0 %758
      %760 = vrot.lane.b32.xlu0 %v368, 118
      %v761 = vpop.permute.xlu0 %760
      %vm762 = vcmp.lt.s32.totalorder %v386, 118
      %v763 = vsel %vm762, %v759, %v761
      %v764 = vsel %vm762, %v757, %v759
      %v765 = vsel %vm762, %v755, %v757
      %v766 = vsel %vm762, %v753, %v755
      %v767 = vsel %vm762, %v751, %v753
      %v768 = vsel %vm762, %v749, %v751
      %v769 = vsel %vm762, %v747, %v749
      %v770 = vsel %vm762, %v761, %v747
      %771 = vrot.lane.b32.xlu0 %v361, 117
      %v772 = vpop.permute.xlu0 %771
      %773 = vrot.lane.b32.xlu0 %v362, 117
      %v774 = vpop.permute.xlu0 %773
      %775 = vrot.lane.b32.xlu0 %v363, 117
      %v776 = vpop.permute.xlu0 %775
      %777 = vrot.lane.b32.xlu0 %v364, 117
      %v778 = vpop.permute.xlu0 %777
      %779 = vrot.lane.b32.xlu0 %v365, 117
      %v780 = vpop.permute.xlu0 %779
      %781 = vrot.lane.b32.xlu0 %v366, 117
      %v782 = vpop.permute.xlu0 %781
      %783 = vrot.lane.b32.xlu0 %v367, 117
      %v784 = vpop.permute.xlu0 %783
      %785 = vrot.lane.b32.xlu0 %v368, 117
      %v786 = vpop.permute.xlu0 %785
      %vm787 = vcmp.lt.s32.totalorder %v386, 117
      %v788 = vsel %vm787, %v784, %v786
      %v789 = vsel %vm787, %v782, %v784
      %v790 = vsel %vm787, %v780, %v782
      %v791 = vsel %vm787, %v778, %v780
      %v792 = vsel %vm787, %v776, %v778
      %v793 = vsel %vm787, %v774, %v776
      %v794 = vsel %vm787, %v772, %v774
      %v795 = vsel %vm787, %v786, %v772
      %796 = vrot.lane.b32.xlu0 %v361, 39
      %v797 = vpop.permute.xlu0 %796
      %798 = vrot.lane.b32.xlu0 %v362, 39
      %v799 = vpop.permute.xlu0 %798
      %800 = vrot.lane.b32.xlu0 %v363, 39
      %v801 = vpop.permute.xlu0 %800
      %802 = vrot.lane.b32.xlu0 %v364, 39
      %v803 = vpop.permute.xlu0 %802
      %804 = vrot.lane.b32.xlu0 %v365, 39
      %v805 = vpop.permute.xlu0 %804
      %806 = vrot.lane.b32.xlu0 %v366, 39
      %v807 = vpop.permute.xlu0 %806
      %808 = vrot.lane.b32.xlu0 %v367, 39
      %v809 = vpop.permute.xlu0 %808
      %810 = vrot.lane.b32.xlu0 %v368, 39
      %v811 = vpop.permute.xlu0 %810
      %vm812 = vcmp.lt.s32.totalorder %v386, 39
      %v813 = vsel %vm812, %v809, %v811
      %v814 = vsel %vm812, %v807, %v809
      %v815 = vsel %vm812, %v805, %v807
      %v816 = vsel %vm812, %v803, %v805
      %v817 = vsel %vm812, %v801, %v803
      %v818 = vsel %vm812, %v799, %v801
      %v819 = vsel %vm812, %v797, %v799
      %v820 = vsel %vm812, %v811, %v797
      %821 = vrot.lane.b32.xlu0 %v361, 38
      %v822 = vpop.permute.xlu0 %821
      %823 = vrot.lane.b32.xlu0 %v362, 38
      %v824 = vpop.permute.xlu0 %823
      %825 = vrot.lane.b32.xlu0 %v363, 38
      %v826 = vpop.permute.xlu0 %825
      %827 = vrot.lane.b32.xlu0 %v364, 38
      %v828 = vpop.permute.xlu0 %827
      %829 = vrot.lane.b32.xlu0 %v365, 38
      %v830 = vpop.permute.xlu0 %829
      %831 = vrot.lane.b32.xlu0 %v366, 38
      %v832 = vpop.permute.xlu0 %831
      %833 = vrot.lane.b32.xlu0 %v367, 38
      %v834 = vpop.permute.xlu0 %833
      %835 = vrot.lane.b32.xlu0 %v368, 38
      %v836 = vpop.permute.xlu0 %835
      %vm837 = vcmp.lt.s32.totalorder %v386, 38
      %v838 = vsel %vm837, %v834, %v836
      %v839 = vsel %vm837, %v832, %v834
      %v840 = vsel %vm837, %v830, %v832
      %v841 = vsel %vm837, %v828, %v830
      %v842 = vsel %vm837, %v826, %v828
      %v843 = vsel %vm837, %v824, %v826
      %v844 = vsel %vm837, %v822, %v824
      %v845 = vsel %vm837, %v836, %v822
      %846 = vrot.lane.b32.xlu0 %v361, 37
      %v847 = vpop.permute.xlu0 %846
      %848 = vrot.lane.b32.xlu0 %v362, 37
      %v849 = vpop.permute.xlu0 %848
      %850 = vrot.lane.b32.xlu0 %v363, 37
      %v851 = vpop.permute.xlu0 %850
      %852 = vrot.lane.b32.xlu0 %v364, 37
      %v853 = vpop.permute.xlu0 %852
      %854 = vrot.lane.b32.xlu0 %v365, 37
      %v855 = vpop.permute.xlu0 %854
      %856 = vrot.lane.b32.xlu0 %v366, 37
      %v857 = vpop.permute.xlu0 %856
      %858 = vrot.lane.b32.xlu0 %v367, 37
      %v859 = vpop.permute.xlu0 %858
      %860 = vrot.lane.b32.xlu0 %v368, 37
      %v861 = vpop.permute.xlu0 %860
      %vm862 = vcmp.lt.s32.totalorder %v386, 37
      %v863 = vsel %vm862, %v859, %v861
      %v864 = vsel %vm862, %v857, %v859
      %v865 = vsel %vm862, %v855, %v857
      %v866 = vsel %vm862, %v853, %v855
      %v867 = vsel %vm862, %v851, %v853
      %v868 = vsel %vm862, %v849, %v851
      %v869 = vsel %vm862, %v847, %v849
      %v870 = vsel %vm862, %v861, %v847
      %871 = vrot.lane.b32.xlu0 %v361, 29
      %v872 = vpop.permute.xlu0 %871
      %873 = vrot.lane.b32.xlu0 %v362, 29
      %v874 = vpop.permute.xlu0 %873
      %875 = vrot.lane.b32.xlu0 %v363, 29
      %v876 = vpop.permute.xlu0 %875
      %877 = vrot.lane.b32.xlu0 %v364, 29
      %v878 = vpop.permute.xlu0 %877
      %879 = vrot.lane.b32.xlu0 %v365, 29
      %v880 = vpop.permute.xlu0 %879
      %881 = vrot.lane.b32.xlu0 %v366, 29
      %v882 = vpop.permute.xlu0 %881
      %883 = vrot.lane.b32.xlu0 %v367, 29
      %v884 = vpop.permute.xlu0 %883
      %885 = vrot.lane.b32.xlu0 %v368, 29
      %v886 = vpop.permute.xlu0 %885
      %vm887 = vcmp.lt.s32.totalorder %v386, 29
      %v888 = vsel %vm887, %v884, %v886
      %v889 = vsel %vm887, %v882, %v884
      %v890 = vsel %vm887, %v880, %v882
      %v891 = vsel %vm887, %v878, %v880
      %v892 = vsel %vm887, %v876, %v878
      %v893 = vsel %vm887, %v874, %v876
      %v894 = vsel %vm887, %v872, %v874
      %v895 = vsel %vm887, %v886, %v872
      %896 = vrot.lane.b32.xlu0 %v361, 28
      %v897 = vpop.permute.xlu0 %896
      %898 = vrot.lane.b32.xlu0 %v362, 28
      %v899 = vpop.permute.xlu0 %898
      %900 = vrot.lane.b32.xlu0 %v363, 28
      %v901 = vpop.permute.xlu0 %900
      %902 = vrot.lane.b32.xlu0 %v364, 28
      %v903 = vpop.permute.xlu0 %902
      %904 = vrot.lane.b32.xlu0 %v365, 28
      %v905 = vpop.permute.xlu0 %904
      %906 = vrot.lane.b32.xlu0 %v366, 28
      %v907 = vpop.permute.xlu0 %906
      %908 = vrot.lane.b32.xlu0 %v367, 28
      %v909 = vpop.permute.xlu0 %908
      %910 = vrot.lane.b32.xlu0 %v368, 28
      %v911 = vpop.permute.xlu0 %910
      %vm912 = vcmp.lt.s32.totalorder %v386, 28
      %v913 = vsel %vm912, %v909, %v911
      %v914 = vsel %vm912, %v907, %v909
      %v915 = vsel %vm912, %v905, %v907
      %v916 = vsel %vm912, %v903, %v905
      %v917 = vsel %vm912, %v901, %v903
      %v918 = vsel %vm912, %v899, %v901
      %v919 = vsel %vm912, %v897, %v899
      %v920 = vsel %vm912, %v911, %v897
      %921 = vrot.lane.b32.xlu0 %v361, 27
      %v922 = vpop.permute.xlu0 %921
      %923 = vrot.lane.b32.xlu0 %v362, 27
      %v924 = vpop.permute.xlu0 %923
      %925 = vrot.lane.b32.xlu0 %v363, 27
      %v926 = vpop.permute.xlu0 %925
      %927 = vrot.lane.b32.xlu0 %v364, 27
      %v928 = vpop.permute.xlu0 %927
      %929 = vrot.lane.b32.xlu0 %v365, 27
      %v930 = vpop.permute.xlu0 %929
      %931 = vrot.lane.b32.xlu0 %v366, 27
      %v932 = vpop.permute.xlu0 %931
      %933 = vrot.lane.b32.xlu0 %v367, 27
      %v934 = vpop.permute.xlu0 %933
      %935 = vrot.lane.b32.xlu0 %v368, 27
      %v936 = vpop.permute.xlu0 %935
      %vm937 = vcmp.lt.s32.totalorder %v386, 27
      %v938 = vsel %vm937, %v934, %v936
      %v939 = vsel %vm937, %v932, %v934
      %v940 = vsel %vm937, %v930, %v932
      %v941 = vsel %vm937, %v928, %v930
      %v942 = vsel %vm937, %v926, %v928
      %v943 = vsel %vm937, %v924, %v926
      %v944 = vsel %vm937, %v922, %v924
      %v945 = vsel %vm937, %v936, %v922
      %946 = vrot.lane.b32.xlu0 %v361, 19
      %v947 = vpop.permute.xlu0 %946
      %948 = vrot.lane.b32.xlu0 %v362, 19
      %v949 = vpop.permute.xlu0 %948
      %950 = vrot.lane.b32.xlu0 %v363, 19
      %v951 = vpop.permute.xlu0 %950
      %952 = vrot.lane.b32.xlu0 %v364, 19
      %v953 = vpop.permute.xlu0 %952
      %954 = vrot.lane.b32.xlu0 %v365, 19
      %v955 = vpop.permute.xlu0 %954
      %956 = vrot.lane.b32.xlu0 %v366, 19
      %v957 = vpop.permute.xlu0 %956
      %958 = vrot.lane.b32.xlu0 %v367, 19
      %v959 = vpop.permute.xlu0 %958
      %960 = vrot.lane.b32.xlu0 %v368, 19
      %v961 = vpop.permute.xlu0 %960
      %vm962 = vcmp.lt.s32.totalorder %v386, 19
      %v963 = vsel %vm962, %v959, %v961
      %v964 = vsel %vm962, %v957, %v959
      %v965 = vsel %vm962, %v955, %v957
      %v966 = vsel %vm962, %v953, %v955
      %v967 = vsel %vm962, %v951, %v953
      %v968 = vsel %vm962, %v949, %v951
      %v969 = vsel %vm962, %v947, %v949
      %v970 = vsel %vm962, %v961, %v947
      %971 = vrot.lane.b32.xlu0 %v361, 18
      %v972 = vpop.permute.xlu0 %971
      %973 = vrot.lane.b32.xlu0 %v362, 18
      %v974 = vpop.permute.xlu0 %973
      %975 = vrot.lane.b32.xlu0 %v363, 18
      %v976 = vpop.permute.xlu0 %975
      %977 = vrot.lane.b32.xlu0 %v364, 18
      %v978 = vpop.permute.xlu0 %977
      %979 = vrot.lane.b32.xlu0 %v365, 18
      %v980 = vpop.permute.xlu0 %979
      %981 = vrot.lane.b32.xlu0 %v366, 18
      %v982 = vpop.permute.xlu0 %981
      %983 = vrot.lane.b32.xlu0 %v367, 18
      %v984 = vpop.permute.xlu0 %983
      %985 = vrot.lane.b32.xlu0 %v368, 18
      %v986 = vpop.permute.xlu0 %985
      %vm987 = vcmp.lt.s32.totalorder %v386, 18
      %v988 = vsel %vm987, %v984, %v986
      %v989 = vsel %vm987, %v982, %v984
      %v990 = vsel %vm987, %v980, %v982
      %v991 = vsel %vm987, %v978, %v980
      %v992 = vsel %vm987, %v976, %v978
      %v993 = vsel %vm987, %v974, %v976
      %v994 = vsel %vm987, %v972, %v974
      %v995 = vsel %vm987, %v986, %v972
      %996 = vrot.lane.b32.xlu0 %v361, 17
      %v997 = vpop.permute.xlu0 %996
      %998 = vrot.lane.b32.xlu0 %v362, 17
      %v999 = vpop.permute.xlu0 %998
      %1000 = vrot.lane.b32.xlu0 %v363, 17
      %v1001 = vpop.permute.xlu0 %1000
      %1002 = vrot.lane.b32.xlu0 %v364, 17
      %v1003 = vpop.permute.xlu0 %1002
      %1004 = vrot.lane.b32.xlu0 %v365, 17
      %v1005 = vpop.permute.xlu0 %1004
      %1006 = vrot.lane.b32.xlu0 %v366, 17
      %v1007 = vpop.permute.xlu0 %1006
      %1008 = vrot.lane.b32.xlu0 %v367, 17
      %v1009 = vpop.permute.xlu0 %1008
      %1010 = vrot.lane.b32.xlu0 %v368, 17
      %v1011 = vpop.permute.xlu0 %1010
      %vm1012 = vcmp.lt.s32.totalorder %v386, 17
      %v1013 = vsel %vm1012, %v1009, %v1011
      %v1014 = vsel %vm1012, %v1007, %v1009
      %v1015 = vsel %vm1012, %v1005, %v1007
      %v1016 = vsel %vm1012, %v1003, %v1005
      %v1017 = vsel %vm1012, %v1001, %v1003
      %v1018 = vsel %vm1012, %v999, %v1001
      %v1019 = vsel %vm1012, %v997, %v999
      %v1020 = vsel %vm1012, %v1011, %v997
      %v1021 = vld [vmem:[%s2] sm:$0xff]
      %v1022 = vld [vmem:[%s2 + $0x8] sm:$0xff]
      %v1023 = vld [vmem:[%s3] sm:$0xff]
      %1025 = vset.pattern.permute.xlu0 0
      %1026 = vperm.xlu0 %1025, %v1023
      %v1027 = vpop.permute.xlu0 %1026
      %vm1029 = vcmask 719872
      %v1031 = vsel %vm1029, %v1022, 0
      %1033 = vmatprep.subr.mxu0 %v394
      %1034 = vmatpush1.msra.mxu0 %v395
      %1035 = vmatprep.subr.mxu0 %v419
      %1036 = vmatpush1.msra.mxu0 %v420
      %1037 = vmatprep.subr.mxu0 %v444
      %1038 = vmatpush1.msra.mxu0 %v445
      %1039 = vmatprep.subr.mxu0 %v469
      %1040 = vmatpush1.msra.mxu0 %v470
      %1041 = vmatprep.subr.mxu0 %v494
      %1042 = vmatpush1.msra.mxu0 %v495
      %1043 = vmatprep.subr.mxu0 %v519
      %1044 = vmatpush1.msra.mxu0 %v520
      %1045 = vmatprep.subr.mxu0 %v544
      %1046 = vmatpush1.msra.mxu0 %v545
      %1047 = vmatprep.subr.mxu0 %v569
      %1048 = vmatpush1.msra.mxu0 %v570
      %1049 = vmatprep.subr.mxu0 %v594
      %1050 = vmatpush1.msra.mxu0 %v595
      %1051 = vmatprep.subr.mxu0 %v619
      %1052 = vmatpush1.msra.mxu0 %v620
      %1053 = vmatprep.subr.mxu0 %v644
      %1054 = vmatpush1.msra.mxu0 %v645
      %1055 = vmatprep.subr.mxu0 %v669
      %1056 = vmatpush1.msra.mxu0 %v670
      %1057 = vmatprep.subr.mxu0 %v694
      %1058 = vmatpush1.msra.mxu0 %v695
      %1059 = vmatprep.subr.mxu0 %v362
      %1060 = vmatpush1.msra.mxu0 %v361
      %1061 = vmatprep.subr.mxu0 %v718
      %1062 = vmatpush1.msra.mxu0 %v719
      %1063 = vmatprep.subr.mxu0 %v743
      %1064 = vmatpush1.msra.mxu0 %v744
      %1065 = vmatprep.subr.mxu0 %v768
      %1066 = vmatpush1.msra.mxu0 %v769
      %1067 = vmatprep.subr.mxu0 %v793
      %1068 = vmatpush1.msra.mxu0 %v794
      %1069 = vmatprep.subr.mxu0 %v818
      %1070 = vmatpush1.msra.mxu0 %v819
      %1071 = vmatprep.subr.mxu0 %v843
      %1072 = vmatpush1.msra.mxu0 %v844
      %1073 = vmatprep.subr.mxu0 %v868
      %1074 = vmatpush1.msra.mxu0 %v869
      %1075 = vmatprep.subr.mxu0 %v893
      %1076 = vmatpush1.msra.mxu0 %v894
      %1077 = vmatprep.subr.mxu0 %v918
      %1078 = vmatpush1.msra.mxu0 %v919
      %1079 = vmatprep.subr.mxu0 %v943
      %1080 = vmatpush1.msra.mxu0 %v944
      %1081 = vmatprep.subr.mxu0 %v968
      %1082 = vmatpush1.msra.mxu0 %v969
      %1083 = vmatprep.subr.mxu0 %v993
      %1084 = vmatpush1.msra.mxu0 %v994
      %1085 = vmatprep.subr.mxu0 %v1018
      %1086 = vmatpush1.msra.mxu0 %v1019
      %1087 = vmatprep.subr.mxu0 0.0
      %1088 = vmatpush1.msra.mxu0 0.0
      %1089 = vmatprep.subr.mxu0 0.0
      %1090 = vmatpush1.msra.mxu0 0.0
      %1091 = vmatprep.subr.mxu0 0.0
      %1092 = vmatpush1.msra.mxu0 0.0
      %1093 = vmatprep.subr.mxu0 0.0
      %1094 = vmatpush1.msra.mxu0 0.0
      %1095 = vmatprep.subr.mxu0 0.0
      %1096 = vmatpush1.msra.mxu0 0.0
      %1097 = vmatprep.mubr.f32.mxu0 %v1031
      %1098 = vmatmul.mubr.f32.gmra.mrb[0].mxu0 %v1021
      %v1099 = vpop.f32.mrb[0].mxu0
      %v1100 = vadd.f32 %v1027, %v1099
      %v1101 = vpop.f32.mrb[0].mxu0
      %v1102 = vadd.f32 %v1027, %v1101
      %1103 = vdwg.mxu0
      %1104 = vmatprep.subr.mxu0 %v392
      %1105 = vmatpush1.msra.mxu0 %v393
      %1106 = vmatprep.subr.mxu0 %v417
      %1107 = vmatpush1.msra.mxu0 %v418
      %1108 = vmatprep.subr.mxu0 %v442
      %1109 = vmatpush1.msra.mxu0 %v443
      %1110 = vmatprep.subr.mxu0 %v467
      %1111 = vmatpush1.msra.mxu0 %v468
      %1112 = vmatprep.subr.mxu0 %v492
      %1113 = vmatpush1.msra.mxu0 %v493
      %1114 = vmatprep.subr.mxu0 %v517
      %1115 = vmatpush1.msra.mxu0 %v518
      %1116 = vmatprep.subr.mxu0 %v542
      %1117 = vmatpush1.msra.mxu0 %v543
      %1118 = vmatprep.subr.mxu0 %v567
      %1119 = vmatpush1.msra.mxu0 %v568
      %1120 = vmatprep.subr.mxu0 %v592
      %1121 = vmatpush1.msra.mxu0 %v593
      %1122 = vmatprep.subr.mxu0 %v617
      %1123 = vmatpush1.msra.mxu0 %v618
      %1124 = vmatprep.subr.mxu0 %v642
      %1125 = vmatpush1.msra.mxu0 %v643
      %1126 = vmatprep.subr.mxu0 %v667
      %1127 = vmatpush1.msra.mxu0 %v668
      %1128 = vmatprep.subr.mxu0 %v692
      %1129 = vmatpush1.msra.mxu0 %v693
      %1130 = vmatprep.subr.mxu0 %v364
      %1131 = vmatpush1.msra.mxu0 %v363
      %1132 = vmatprep.subr.mxu0 %v716
      %1133 = vmatpush1.msra.mxu0 %v717
      %1134 = vmatprep.subr.mxu0 %v741
      %1135 = vmatpush1.msra.mxu0 %v742
      %1136 = vmatprep.subr.mxu0 %v766
      %1137 = vmatpush1.msra.mxu0 %v767
      %1138 = vmatprep.subr.mxu0 %v791
      %1139 = vmatpush1.msra.mxu0 %v792
      %1140 = vmatprep.subr.mxu0 %v816
      %1141 = vmatpush1.msra.mxu0 %v817
      %1142 = vmatprep.subr.mxu0 %v841
      %1143 = vmatpush1.msra.mxu0 %v842
      %1144 = vmatprep.subr.mxu0 %v866
      %1145 = vmatpush1.msra.mxu0 %v867
      %1146 = vmatprep.subr.mxu0 %v891
      %1147 = vmatpush1.msra.mxu0 %v892
      %1148 = vmatprep.subr.mxu0 %v916
      %1149 = vmatpush1.msra.mxu0 %v917
      %1150 = vmatprep.subr.mxu0 %v941
      %1151 = vmatpush1.msra.mxu0 %v942
      %1152 = vmatprep.subr.mxu0 %v966
      %1153 = vmatpush1.msra.mxu0 %v967
      %1154 = vmatprep.subr.mxu0 %v991
      %1155 = vmatpush1.msra.mxu0 %v992
      %1156 = vmatprep.subr.mxu0 %v1016
      %1157 = vmatpush1.msra.mxu0 %v1017
      %1158 = vmatprep.subr.mxu0 0.0
      %1159 = vmatpush1.msra.mxu0 0.0
      %1160 = vmatprep.subr.mxu0 0.0
      %1161 = vmatpush1.msra.mxu0 0.0
      %1162 = vmatprep.subr.mxu0 0.0
      %1163 = vmatpush1.msra.mxu0 0.0
      %1164 = vmatprep.subr.mxu0 0.0
      %1165 = vmatpush1.msra.mxu0 0.0
      %1166 = vmatprep.subr.mxu0 0.0
      %1167 = vmatpush1.msra.mxu0 0.0
      %1168 = vmatprep.mubr.f32.mxu0 %v1031
      %1169 = vmatmul.mubr.f32.gmra.mrb[0].mxu0 %v1021
      %v1170 = vpop.f32.mrb[0].mxu0
      %v1171 = vadd.f32 %v1027, %v1170
      %v1172 = vpop.f32.mrb[0].mxu0
      %v1173 = vadd.f32 %v1027, %v1172
      %1174 = vdwg.mxu0
      %1175 = vmatprep.subr.mxu0 %v390
      %1176 = vmatpush1.msra.mxu0 %v391
      %1177 = vmatprep.subr.mxu0 %v415
      %1178 = vmatpush1.msra.mxu0 %v416
      %1179 = vmatprep.subr.mxu0 %v440
      %1180 = vmatpush1.msra.mxu0 %v441
      %1181 = vmatprep.subr.mxu0 %v465
      %1182 = vmatpush1.msra.mxu0 %v466
      %1183 = vmatprep.subr.mxu0 %v490
      %1184 = vmatpush1.msra.mxu0 %v491
      %1185 = vmatprep.subr.mxu0 %v515
      %1186 = vmatpush1.msra.mxu0 %v516
      %1187 = vmatprep.subr.mxu0 %v540
      %1188 = vmatpush1.msra.mxu0 %v541
      %1189 = vmatprep.subr.mxu0 %v565
      %1190 = vmatpush1.msra.mxu0 %v566
      %1191 = vmatprep.subr.mxu0 %v590
      %1192 = vmatpush1.msra.mxu0 %v591
      %1193 = vmatprep.subr.mxu0 %v615
      %1194 = vmatpush1.msra.mxu0 %v616
      %1195 = vmatprep.subr.mxu0 %v640
      %1196 = vmatpush1.msra.mxu0 %v641
      %1197 = vmatprep.subr.mxu0 %v665
      %1198 = vmatpush1.msra.mxu0 %v666
      %1199 = vmatprep.subr.mxu0 %v690
      %1200 = vmatpush1.msra.mxu0 %v691
      %1201 = vmatprep.subr.mxu0 %v366
      %1202 = vmatpush1.msra.mxu0 %v365
      %1203 = vmatprep.subr.mxu0 %v714
      %1204 = vmatpush1.msra.mxu0 %v715
      %1205 = vmatprep.subr.mxu0 %v739
      %1206 = vmatpush1.msra.mxu0 %v740
      %1207 = vmatprep.subr.mxu0 %v764
      %1208 = vmatpush1.msra.mxu0 %v765
      %1209 = vmatprep.subr.mxu0 %v789
      %1210 = vmatpush1.msra.mxu0 %v790
      %1211 = vmatprep.subr.mxu0 %v814
      %1212 = vmatpush1.msra.mxu0 %v815
      %1213 = vmatprep.subr.mxu0 %v839
      %1214 = vmatpush1.msra.mxu0 %v840
      %1215 = vmatprep.subr.mxu0 %v864
      %1216 = vmatpush1.msra.mxu0 %v865
      %1217 = vmatprep.subr.mxu0 %v889
      %1218 = vmatpush1.msra.mxu0 %v890
      %1219 = vmatprep.subr.mxu0 %v914
      %1220 = vmatpush1.msra.mxu0 %v915
      %1221 = vmatprep.subr.mxu0 %v939
      %1222 = vmatpush1.msra.mxu0 %v940
      %1223 = vmatprep.subr.mxu0 %v964
      %1224 = vmatpush1.msra.mxu0 %v965
      %1225 = vmatprep.subr.mxu0 %v989
      %1226 = vmatpush1.msra.mxu0 %v990
      %1227 = vmatprep.subr.mxu0 %v1014
      %1228 = vmatpush1.msra.mxu0 %v1015
      %1229 = vmatprep.subr.mxu0 0.0
      %1230 = vmatpush1.msra.mxu0 0.0
      %1231 = vmatprep.subr.mxu0 0.0
      %1232 = vmatpush1.msra.mxu0 0.0
      %1233 = vmatprep.subr.mxu0 0.0
      %1234 = vmatpush1.msra.mxu0 0.0
      %1235 = vmatprep.subr.mxu0 0.0
      %1236 = vmatpush1.msra.mxu0 0.0
      %1237 = vmatprep.subr.mxu0 0.0
      %1238 = vmatpush1.msra.mxu0 0.0
      %1239 = vmatprep.mubr.f32.mxu0 %v1031
      %1240 = vmatmul.mubr.f32.gmra.mrb[0].mxu0 %v1021
      %v1241 = vpop.f32.mrb[0].mxu0
      %v1242 = vadd.f32 %v1027, %v1241
      %v1243 = vpop.f32.mrb[0].mxu0
      %v1244 = vadd.f32 %v1027, %v1243
      %1245 = vdwg.mxu0
      %1246 = vmatprep.subr.mxu0 %v388
      %1247 = vmatpush1.msra.mxu0 %v389
      %1248 = vmatprep.subr.mxu0 %v413
      %1249 = vmatpush1.msra.mxu0 %v414
      %1250 = vmatprep.subr.mxu0 %v438
      %1251 = vmatpush1.msra.mxu0 %v439
      %1252 = vmatprep.subr.mxu0 %v463
      %1253 = vmatpush1.msra.mxu0 %v464
      %1254 = vmatprep.subr.mxu0 %v488
      %1255 = vmatpush1.msra.mxu0 %v489
      %1256 = vmatprep.subr.mxu0 %v513
      %1257 = vmatpush1.msra.mxu0 %v514
      %1258 = vmatprep.subr.mxu0 %v538
      %1259 = vmatpush1.msra.mxu0 %v539
      %1260 = vmatprep.subr.mxu0 %v563
      %1261 = vmatpush1.msra.mxu0 %v564
      %1262 = vmatprep.subr.mxu0 %v588
      %1263 = vmatpush1.msra.mxu0 %v589
      %1264 = vmatprep.subr.mxu0 %v613
      %1265 = vmatpush1.msra.mxu0 %v614
      %1266 = vmatprep.subr.mxu0 %v638
      %1267 = vmatpush1.msra.mxu0 %v639
      %1268 = vmatprep.subr.mxu0 %v663
      %1269 = vmatpush1.msra.mxu0 %v664
      %1270 = vmatprep.subr.mxu0 %v688
      %1271 = vmatpush1.msra.mxu0 %v689
      %1272 = vmatprep.subr.mxu0 %v368
      %1273 = vmatpush1.msra.mxu0 %v367
      %1274 = vmatprep.subr.mxu0 %v720
      %1275 = vmatpush1.msra.mxu0 %v713
      %1276 = vmatprep.subr.mxu0 %v745
      %1277 = vmatpush1.msra.mxu0 %v738
      %1278 = vmatprep.subr.mxu0 %v770
      %1279 = vmatpush1.msra.mxu0 %v763
      %1280 = vmatprep.subr.mxu0 %v795
      %1281 = vmatpush1.msra.mxu0 %v788
      %1282 = vmatprep.subr.mxu0 %v820
      %1283 = vmatpush1.msra.mxu0 %v813
      %1284 = vmatprep.subr.mxu0 %v845
      %1285 = vmatpush1.msra.mxu0 %v838
      %1286 = vmatprep.subr.mxu0 %v870
      %1287 = vmatpush1.msra.mxu0 %v863
      %1288 = vmatprep.subr.mxu0 %v895
      %1289 = vmatpush1.msra.mxu0 %v888
      %1290 = vmatprep.subr.mxu0 %v920
      %1291 = vmatpush1.msra.mxu0 %v913
      %1292 = vmatprep.subr.mxu0 %v945
      %1293 = vmatpush1.msra.mxu0 %v938
      %1294 = vmatprep.subr.mxu0 %v970
      %1295 = vmatpush1.msra.mxu0 %v963
      %1296 = vmatprep.subr.mxu0 %v995
      %1297 = vmatpush1.msra.mxu0 %v988
      %1298 = vmatprep.subr.mxu0 %v1020
      %1299 = vmatpush1.msra.mxu0 %v1013
      %1300 = vmatprep.subr.mxu0 0.0
      %1301 = vmatpush1.msra.mxu0 0.0
      %1302 = vmatprep.subr.mxu0 0.0
      %1303 = vmatpush1.msra.mxu0 0.0
      %1304 = vmatprep.subr.mxu0 0.0
      %1305 = vmatpush1.msra.mxu0 0.0
      %1306 = vmatprep.subr.mxu0 0.0
      %1307 = vmatpush1.msra.mxu0 0.0
      %1308 = vmatprep.subr.mxu0 0.0
      %1309 = vmatpush1.msra.mxu0 0.0
      %1310 = vmatprep.mubr.f32.mxu0 %v1031
      %1311 = vmatmul.mubr.f32.gmra.mrb[0].mxu0 %v1021
      %v1312 = vpop.f32.mrb[0].mxu0
      %v1313 = vadd.f32 %v1027, %v1312
      %v1314 = vpop.f32.mrb[0].mxu0
      %v1315 = vadd.f32 %v1027, %v1314
      %1316 = vdwg.mxu0
      %v1318 = vlaneseq
      %v1319 = vshrl.u32 %v1318, 7
      %v1320 = vsub.s32 0, %v1319
      %v1321 = vrot.slane %v360, %v1320
      %v1322 = vlaneseq
      %v1323 = vshrl.u32 %v1322, 7
      %v1324 = vsub.s32 1, %v1323
      %v1325 = vrot.slane %v360, %v1324
      %v1326 = vlaneseq
      %v1327 = vshrl.u32 %v1326, 7
      %v1328 = vsub.s32 2, %v1327
      %v1329 = vrot.slane %v360, %v1328
      %v1330 = vlaneseq
      %v1331 = vshrl.u32 %v1330, 7
      %v1332 = vsub.s32 3, %v1331
      %v1333 = vrot.slane %v360, %v1332
      %v1334 = vlaneseq
      %v1335 = vshrl.u32 %v1334, 7
      %v1336 = vsub.s32 4, %v1335
      %v1337 = vrot.slane %v360, %v1336
      %v1338 = vlaneseq
      %v1339 = vshrl.u32 %v1338, 7
      %v1340 = vsub.s32 5, %v1339
      %v1341 = vrot.slane %v360, %v1340
      %v1342 = vlaneseq
      %v1343 = vshrl.u32 %v1342, 7
      %v1344 = vsub.s32 6, %v1343
      %v1345 = vrot.slane %v360, %v1344
      %v1346 = vlaneseq
      %v1347 = vshrl.u32 %v1346, 7
      %v1348 = vsub.s32 7, %v1347
      %v1349 = vrot.slane %v360, %v1348
      %v1358 = vmul.f32 %v1100, %v1321
      %v1359 = vmul.f32 %v1102, %v1325
      %v1360 = vmul.f32 %v1171, %v1329
      %v1361 = vmul.f32 %v1173, %v1333
      %v1362 = vmul.f32 %v1242, %v1337
      %v1363 = vmul.f32 %v1244, %v1341
      %v1364 = vmul.f32 %v1313, %v1345
      %v1365 = vmul.f32 %v1315, %v1349
      %v1366 = vadd.f32 %v1358, %v1359
      %v1367 = vadd.f32 %v1366, %v1360
      %v1368 = vadd.f32 %v1367, %v1361
      %v1369 = vadd.f32 %v1368, %v1362
      %v1370 = vadd.f32 %v1369, %v1363
      %v1371 = vadd.f32 %v1370, %v1364
      %v1372 = vadd.f32 %v1371, %v1365
      %1373 = vadd.xlane.f32.xlu0 %v1372
      %v1374 = vpop.xlane.xlu0 %1373
      %v1375 = vmul.f32 %v1358, %v1358
      %v1376 = vmul.f32 %v1359, %v1359
      %v1377 = vmul.f32 %v1360, %v1360
      %v1378 = vmul.f32 %v1361, %v1361
      %v1379 = vmul.f32 %v1362, %v1362
      %v1380 = vmul.f32 %v1363, %v1363
      %v1381 = vmul.f32 %v1364, %v1364
      %v1382 = vmul.f32 %v1365, %v1365
      %v1383 = vadd.f32 %v1375, %v1376
      %v1384 = vadd.f32 %v1383, %v1377
      %v1385 = vadd.f32 %v1384, %v1378
      %v1386 = vadd.f32 %v1385, %v1379
      %v1387 = vadd.f32 %v1386, %v1380
      %v1388 = vadd.f32 %v1387, %v1381
      %v1389 = vadd.f32 %v1388, %v1382
      %1390 = vadd.xlane.f32.xlu0 %v1389
      %v1391 = vpop.xlane.xlu0 %1390
      %v1392 = vmul.f32 %v1374, 0.001953125
      %v1393 = vmul.f32 %v1391, 0.001953125
      %v1394 = vmul.f32 %v1392, %v1392
      %v1395 = vsub.f32 %v1393, %v1394
      %v1396 = vmax.f32 %v1395, 0.0
      %v1397 = vsub.f32 %v1100, %v1392
      %v1398 = vsub.f32 %v1102, %v1392
      %v1399 = vsub.f32 %v1171, %v1392
      %v1400 = vsub.f32 %v1173, %v1392
      %v1401 = vsub.f32 %v1242, %v1392
      %v1402 = vsub.f32 %v1244, %v1392
      %v1403 = vsub.f32 %v1313, %v1392
      %v1404 = vsub.f32 %v1315, %v1392
      %v1405 = vadd.f32 %v1396, 1e-05
      %v1406 = vrsqrt.pop %v1405
      %v1407 = vmul.f32 %v1397, %v1406
      %v1408 = vmul.f32 %v1398, %v1406
      %v1409 = vmul.f32 %v1399, %v1406
      %v1410 = vmul.f32 %v1400, %v1406
      %v1411 = vmul.f32 %v1401, %v1406
      %v1412 = vmul.f32 %v1402, %v1406
      %v1413 = vmul.f32 %v1403, %v1406
      %v1414 = vmul.f32 %v1404, %v1406
      %v1415 = vld [vmem:[%s4] sm:$0xff]
      %1417 = vset.pattern.permute.xlu0 0
      %1418 = vperm.xlu0 %1417, %v1415
      %v1419 = vpop.permute.xlu0 %1418
      %v1421 = vmul.f32 %v1407, %v1419
      %v1422 = vmul.f32 %v1408, %v1419
      %v1423 = vmul.f32 %v1409, %v1419
      %v1424 = vmul.f32 %v1410, %v1419
      %v1425 = vmul.f32 %v1411, %v1419
      %v1426 = vmul.f32 %v1412, %v1419
      %v1427 = vmul.f32 %v1413, %v1419
      %v1428 = vmul.f32 %v1414, %v1419
      %v1429 = vld [vmem:[%s5] sm:$0xff]
      %1431 = vset.pattern.permute.xlu0 0
      %1432 = vperm.xlu0 %1431, %v1429
      %v1433 = vpop.permute.xlu0 %1432
      %v1435 = vadd.f32 %v1421, %v1433
      %v1436 = vadd.f32 %v1422, %v1433
      %v1437 = vadd.f32 %v1423, %v1433
      %v1438 = vadd.f32 %v1424, %v1433
      %v1439 = vadd.f32 %v1425, %v1433
      %v1440 = vadd.f32 %v1426, %v1433
      %v1441 = vadd.f32 %v1427, %v1433
      %v1442 = vadd.f32 %v1428, %v1433
      %vm1443 = vcmp.ge.f32.partialorder %v1435, 0.0
      %vm1444 = vcmp.ge.f32.partialorder %v1436, 0.0
      %vm1445 = vcmp.ge.f32.partialorder %v1437, 0.0
      %vm1446 = vcmp.ge.f32.partialorder %v1438, 0.0
      %vm1447 = vcmp.ge.f32.partialorder %v1439, 0.0
      %vm1448 = vcmp.ge.f32.partialorder %v1440, 0.0
      %vm1449 = vcmp.ge.f32.partialorder %v1441, 0.0
      %vm1450 = vcmp.ge.f32.partialorder %v1442, 0.0
      %v1451 = vmul.f32 %v1435, 0.01
      %v1452 = vmul.f32 %v1436, 0.01
      %v1453 = vmul.f32 %v1437, 0.01
      %v1454 = vmul.f32 %v1438, 0.01
      %v1455 = vmul.f32 %v1439, 0.01
      %v1456 = vmul.f32 %v1440, 0.01
      %v1457 = vmul.f32 %v1441, 0.01
      %v1458 = vmul.f32 %v1442, 0.01
      %v1459 = vsel %vm1443, %v1435, %v1451
      %v1460 = vsel %vm1444, %v1436, %v1452
      %v1461 = vsel %vm1445, %v1437, %v1453
      %v1462 = vsel %vm1446, %v1438, %v1454
      %v1463 = vsel %vm1447, %v1439, %v1455
      %v1464 = vsel %vm1448, %v1440, %v1456
      %v1465 = vsel %vm1449, %v1441, %v1457
      %v1466 = vsel %vm1450, %v1442, %v1458
      %v1467 = vmul.f32 %v1459, %v1321
      %v1468 = vmul.f32 %v1460, %v1325
      %v1469 = vmul.f32 %v1461, %v1329
      %v1470 = vmul.f32 %v1462, %v1333
      %v1471 = vmul.f32 %v1463, %v1337
      %v1472 = vmul.f32 %v1464, %v1341
      %v1473 = vmul.f32 %v1465, %v1345
      %v1474 = vmul.f32 %v1466, %v1349
      %1475 = vrot.lane.b32.xlu0 %v1467, 111
      %v1476 = vpop.permute.xlu0 %1475
      %1477 = vrot.lane.b32.xlu0 %v1468, 111
      %v1478 = vpop.permute.xlu0 %1477
      %1479 = vrot.lane.b32.xlu0 %v1469, 111
      %v1480 = vpop.permute.xlu0 %1479
      %1481 = vrot.lane.b32.xlu0 %v1470, 111
      %v1482 = vpop.permute.xlu0 %1481
      %1483 = vrot.lane.b32.xlu0 %v1471, 111
      %v1484 = vpop.permute.xlu0 %1483
      %1485 = vrot.lane.b32.xlu0 %v1472, 111
      %v1486 = vpop.permute.xlu0 %1485
      %1487 = vrot.lane.b32.xlu0 %v1473, 111
      %v1488 = vpop.permute.xlu0 %1487
      %1489 = vrot.lane.b32.xlu0 %v1474, 111
      %v1490 = vpop.permute.xlu0 %1489
      %v1491 = vsel %vm387, %v1488, %v1490
      %v1492 = vsel %vm387, %v1486, %v1488
      %v1493 = vsel %vm387, %v1484, %v1486
      %v1494 = vsel %vm387, %v1482, %v1484
      %v1495 = vsel %vm387, %v1480, %v1482
      %v1496 = vsel %vm387, %v1478, %v1480
      %v1497 = vsel %vm387, %v1476, %v1478
      %v1498 = vsel %vm387, %v1490, %v1476
      %1499 = vrot.lane.b32.xlu0 %v1467, 110
      %v1500 = vpop.permute.xlu0 %1499
      %1501 = vrot.lane.b32.xlu0 %v1468, 110
      %v1502 = vpop.permute.xlu0 %1501
      %1503 = vrot.lane.b32.xlu0 %v1469, 110
      %v1504 = vpop.permute.xlu0 %1503
      %1505 = vrot.lane.b32.xlu0 %v1470, 110
      %v1506 = vpop.permute.xlu0 %1505
      %1507 = vrot.lane.b32.xlu0 %v1471, 110
      %v1508 = vpop.permute.xlu0 %1507
      %1509 = vrot.lane.b32.xlu0 %v1472, 110
      %v1510 = vpop.permute.xlu0 %1509
      %1511 = vrot.lane.b32.xlu0 %v1473, 110
      %v1512 = vpop.permute.xlu0 %1511
      %1513 = vrot.lane.b32.xlu0 %v1474, 110
      %v1514 = vpop.permute.xlu0 %1513
      %v1515 = vsel %vm412, %v1512, %v1514
      %v1516 = vsel %vm412, %v1510, %v1512
      %v1517 = vsel %vm412, %v1508, %v1510
      %v1518 = vsel %vm412, %v1506, %v1508
      %v1519 = vsel %vm412, %v1504, %v1506
      %v1520 = vsel %vm412, %v1502, %v1504
      %v1521 = vsel %vm412, %v1500, %v1502
      %v1522 = vsel %vm412, %v1514, %v1500
      %1523 = vrot.lane.b32.xlu0 %v1467, 109
      %v1524 = vpop.permute.xlu0 %1523
      %1525 = vrot.lane.b32.xlu0 %v1468, 109
      %v1526 = vpop.permute.xlu0 %1525
      %1527 = vrot.lane.b32.xlu0 %v1469, 109
      %v1528 = vpop.permute.xlu0 %1527
      %1529 = vrot.lane.b32.xlu0 %v1470, 109
      %v1530 = vpop.permute.xlu0 %1529
      %1531 = vrot.lane.b32.xlu0 %v1471, 109
      %v1532 = vpop.permute.xlu0 %1531
      %1533 = vrot.lane.b32.xlu0 %v1472, 109
      %v1534 = vpop.permute.xlu0 %1533
      %1535 = vrot.lane.b32.xlu0 %v1473, 109
      %v1536 = vpop.permute.xlu0 %1535
      %1537 = vrot.lane.b32.xlu0 %v1474, 109
      %v1538 = vpop.permute.xlu0 %1537
      %v1539 = vsel %vm437, %v1536, %v1538
      %v1540 = vsel %vm437, %v1534, %v1536
      %v1541 = vsel %vm437, %v1532, %v1534
      %v1542 = vsel %vm437, %v1530, %v1532
      %v1543 = vsel %vm437, %v1528, %v1530
      %v1544 = vsel %vm437, %v1526, %v1528
      %v1545 = vsel %vm437, %v1524, %v1526
      %v1546 = vsel %vm437, %v1538, %v1524
      %1547 = vrot.lane.b32.xlu0 %v1467, 101
      %v1548 = vpop.permute.xlu0 %1547
      %1549 = vrot.lane.b32.xlu0 %v1468, 101
      %v1550 = vpop.permute.xlu0 %1549
      %1551 = vrot.lane.b32.xlu0 %v1469, 101
      %v1552 = vpop.permute.xlu0 %1551
      %1553 = vrot.lane.b32.xlu0 %v1470, 101
      %v1554 = vpop.permute.xlu0 %1553
      %1555 = vrot.lane.b32.xlu0 %v1471, 101
      %v1556 = vpop.permute.xlu0 %1555
      %1557 = vrot.lane.b32.xlu0 %v1472, 101
      %v1558 = vpop.permute.xlu0 %1557
      %1559 = vrot.lane.b32.xlu0 %v1473, 101
      %v1560 = vpop.permute.xlu0 %1559
      %1561 = vrot.lane.b32.xlu0 %v1474, 101
      %v1562 = vpop.permute.xlu0 %1561
      %v1563 = vsel %vm462, %v1560, %v1562
      %v1564 = vsel %vm462, %v1558, %v1560
      %v1565 = vsel %vm462, %v1556, %v1558
      %v1566 = vsel %vm462, %v1554, %v1556
      %v1567 = vsel %vm462, %v1552, %v1554
      %v1568 = vsel %vm462, %v1550, %v1552
      %v1569 = vsel %vm462, %v1548, %v1550
      %v1570 = vsel %vm462, %v1562, %v1548
      %1571 = vrot.lane.b32.xlu0 %v1467, 100
      %v1572 = vpop.permute.xlu0 %1571
      %1573 = vrot.lane.b32.xlu0 %v1468, 100
      %v1574 = vpop.permute.xlu0 %1573
      %1575 = vrot.lane.b32.xlu0 %v1469, 100
      %v1576 = vpop.permute.xlu0 %1575
      %1577 = vrot.lane.b32.xlu0 %v1470, 100
      %v1578 = vpop.permute.xlu0 %1577
      %1579 = vrot.lane.b32.xlu0 %v1471, 100
      %v1580 = vpop.permute.xlu0 %1579
      %1581 = vrot.lane.b32.xlu0 %v1472, 100
      %v1582 = vpop.permute.xlu0 %1581
      %1583 = vrot.lane.b32.xlu0 %v1473, 100
      %v1584 = vpop.permute.xlu0 %1583
      %1585 = vrot.lane.b32.xlu0 %v1474, 100
      %v1586 = vpop.permute.xlu0 %1585
      %v1587 = vsel %vm487, %v1584, %v1586
      %v1588 = vsel %vm487, %v1582, %v1584
      %v1589 = vsel %vm487, %v1580, %v1582
      %v1590 = vsel %vm487, %v1578, %v1580
      %v1591 = vsel %vm487, %v1576, %v1578
      %v1592 = vsel %vm487, %v1574, %v1576
      %v1593 = vsel %vm487, %v1572, %v1574
      %v1594 = vsel %vm487, %v1586, %v1572
      %1595 = vrot.lane.b32.xlu0 %v1467, 99
      %v1596 = vpop.permute.xlu0 %1595
      %1597 = vrot.lane.b32.xlu0 %v1468, 99
      %v1598 = vpop.permute.xlu0 %1597
      %1599 = vrot.lane.b32.xlu0 %v1469, 99
      %v1600 = vpop.permute.xlu0 %1599
      %1601 = vrot.lane.b32.xlu0 %v1470, 99
      %v1602 = vpop.permute.xlu0 %1601
      %1603 = vrot.lane.b32.xlu0 %v1471, 99
      %v1604 = vpop.permute.xlu0 %1603
      %1605 = vrot.lane.b32.xlu0 %v1472, 99
      %v1606 = vpop.permute.xlu0 %1605
      %1607 = vrot.lane.b32.xlu0 %v1473, 99
      %v1608 = vpop.permute.xlu0 %1607
      %1609 = vrot.lane.b32.xlu0 %v1474, 99
      %v1610 = vpop.permute.xlu0 %1609
      %v1611 = vsel %vm512, %v1608, %v1610
      %v1612 = vsel %vm512, %v1606, %v1608
      %v1613 = vsel %vm512, %v1604, %v1606
      %v1614 = vsel %vm512, %v1602, %v1604
      %v1615 = vsel %vm512, %v1600, %v1602
      %v1616 = vsel %vm512, %v1598, %v1600
      %v1617 = vsel %vm512, %v1596, %v1598
      %v1618 = vsel %vm512, %v1610, %v1596
      %1619 = vrot.lane.b32.xlu0 %v1467, 91
      %v1620 = vpop.permute.xlu0 %1619
      %1621 = vrot.lane.b32.xlu0 %v1468, 91
      %v1622 = vpop.permute.xlu0 %1621
      %1623 = vrot.lane.b32.xlu0 %v1469, 91
      %v1624 = vpop.permute.xlu0 %1623
      %1625 = vrot.lane.b32.xlu0 %v1470, 91
      %v1626 = vpop.permute.xlu0 %1625
      %1627 = vrot.lane.b32.xlu0 %v1471, 91
      %v1628 = vpop.permute.xlu0 %1627
      %1629 = vrot.lane.b32.xlu0 %v1472, 91
      %v1630 = vpop.permute.xlu0 %1629
      %1631 = vrot.lane.b32.xlu0 %v1473, 91
      %v1632 = vpop.permute.xlu0 %1631
      %1633 = vrot.lane.b32.xlu0 %v1474, 91
      %v1634 = vpop.permute.xlu0 %1633
      %v1635 = vsel %vm537, %v1632, %v1634
      %v1636 = vsel %vm537, %v1630, %v1632
      %v1637 = vsel %vm537, %v1628, %v1630
      %v1638 = vsel %vm537, %v1626, %v1628
      %v1639 = vsel %vm537, %v1624, %v1626
      %v1640 = vsel %vm537, %v1622, %v1624
      %v1641 = vsel %vm537, %v1620, %v1622
      %v1642 = vsel %vm537, %v1634, %v1620
      %1643 = vrot.lane.b32.xlu0 %v1467, 90
      %v1644 = vpop.permute.xlu0 %1643
      %1645 = vrot.lane.b32.xlu0 %v1468, 90
      %v1646 = vpop.permute.xlu0 %1645
      %1647 = vrot.lane.b32.xlu0 %v1469, 90
      %v1648 = vpop.permute.xlu0 %1647
      %1649 = vrot.lane.b32.xlu0 %v1470, 90
      %v1650 = vpop.permute.xlu0 %1649
      %1651 = vrot.lane.b32.xlu0 %v1471, 90
      %v1652 = vpop.permute.xlu0 %1651
      %1653 = vrot.lane.b32.xlu0 %v1472, 90
      %v1654 = vpop.permute.xlu0 %1653
      %1655 = vrot.lane.b32.xlu0 %v1473, 90
      %v1656 = vpop.permute.xlu0 %1655
      %1657 = vrot.lane.b32.xlu0 %v1474, 90
      %v1658 = vpop.permute.xlu0 %1657
      %v1659 = vsel %vm562, %v1656, %v1658
      %v1660 = vsel %vm562, %v1654, %v1656
      %v1661 = vsel %vm562, %v1652, %v1654
      %v1662 = vsel %vm562, %v1650, %v1652
      %v1663 = vsel %vm562, %v1648, %v1650
      %v1664 = vsel %vm562, %v1646, %v1648
      %v1665 = vsel %vm562, %v1644, %v1646
      %v1666 = vsel %vm562, %v1658, %v1644
      %1667 = vrot.lane.b32.xlu0 %v1467, 89
      %v1668 = vpop.permute.xlu0 %1667
      %1669 = vrot.lane.b32.xlu0 %v1468, 89
      %v1670 = vpop.permute.xlu0 %1669
      %1671 = vrot.lane.b32.xlu0 %v1469, 89
      %v1672 = vpop.permute.xlu0 %1671
      %1673 = vrot.lane.b32.xlu0 %v1470, 89
      %v1674 = vpop.permute.xlu0 %1673
      %1675 = vrot.lane.b32.xlu0 %v1471, 89
      %v1676 = vpop.permute.xlu0 %1675
      %1677 = vrot.lane.b32.xlu0 %v1472, 89
      %v1678 = vpop.permute.xlu0 %1677
      %1679 = vrot.lane.b32.xlu0 %v1473, 89
      %v1680 = vpop.permute.xlu0 %1679
      %1681 = vrot.lane.b32.xlu0 %v1474, 89
      %v1682 = vpop.permute.xlu0 %1681
      %v1683 = vsel %vm587, %v1680, %v1682
      %v1684 = vsel %vm587, %v1678, %v1680
      %v1685 = vsel %vm587, %v1676, %v1678
      %v1686 = vsel %vm587, %v1674, %v1676
      %v1687 = vsel %vm587, %v1672, %v1674
      %v1688 = vsel %vm587, %v1670, %v1672
      %v1689 = vsel %vm587, %v1668, %v1670
      %v1690 = vsel %vm587, %v1682, %v1668
      %1691 = vrot.lane.b32.xlu0 %v1467, 11
      %v1692 = vpop.permute.xlu0 %1691
      %1693 = vrot.lane.b32.xlu0 %v1468, 11
      %v1694 = vpop.permute.xlu0 %1693
      %1695 = vrot.lane.b32.xlu0 %v1469, 11
      %v1696 = vpop.permute.xlu0 %1695
      %1697 = vrot.lane.b32.xlu0 %v1470, 11
      %v1698 = vpop.permute.xlu0 %1697
      %1699 = vrot.lane.b32.xlu0 %v1471, 11
      %v1700 = vpop.permute.xlu0 %1699
      %1701 = vrot.lane.b32.xlu0 %v1472, 11
      %v1702 = vpop.permute.xlu0 %1701
      %1703 = vrot.lane.b32.xlu0 %v1473, 11
      %v1704 = vpop.permute.xlu0 %1703
      %1705 = vrot.lane.b32.xlu0 %v1474, 11
      %v1706 = vpop.permute.xlu0 %1705
      %v1707 = vsel %vm612, %v1704, %v1706
      %v1708 = vsel %vm612, %v1702, %v1704
      %v1709 = vsel %vm612, %v1700, %v1702
      %v1710 = vsel %vm612, %v1698, %v1700
      %v1711 = vsel %vm612, %v1696, %v1698
      %v1712 = vsel %vm612, %v1694, %v1696
      %v1713 = vsel %vm612, %v1692, %v1694
      %v1714 = vsel %vm612, %v1706, %v1692
      %1715 = vrot.lane.b32.xlu0 %v1467, 10
      %v1716 = vpop.permute.xlu0 %1715
      %1717 = vrot.lane.b32.xlu0 %v1468, 10
      %v1718 = vpop.permute.xlu0 %1717
      %1719 = vrot.lane.b32.xlu0 %v1469, 10
      %v1720 = vpop.permute.xlu0 %1719
      %1721 = vrot.lane.b32.xlu0 %v1470, 10
      %v1722 = vpop.permute.xlu0 %1721
      %1723 = vrot.lane.b32.xlu0 %v1471, 10
      %v1724 = vpop.permute.xlu0 %1723
      %1725 = vrot.lane.b32.xlu0 %v1472, 10
      %v1726 = vpop.permute.xlu0 %1725
      %1727 = vrot.lane.b32.xlu0 %v1473, 10
      %v1728 = vpop.permute.xlu0 %1727
      %1729 = vrot.lane.b32.xlu0 %v1474, 10
      %v1730 = vpop.permute.xlu0 %1729
      %v1731 = vsel %vm637, %v1728, %v1730
      %v1732 = vsel %vm637, %v1726, %v1728
      %v1733 = vsel %vm637, %v1724, %v1726
      %v1734 = vsel %vm637, %v1722, %v1724
      %v1735 = vsel %vm637, %v1720, %v1722
      %v1736 = vsel %vm637, %v1718, %v1720
      %v1737 = vsel %vm637, %v1716, %v1718
      %v1738 = vsel %vm637, %v1730, %v1716
      %1739 = vrot.lane.b32.xlu0 %v1467, 9
      %v1740 = vpop.permute.xlu0 %1739
      %1741 = vrot.lane.b32.xlu0 %v1468, 9
      %v1742 = vpop.permute.xlu0 %1741
      %1743 = vrot.lane.b32.xlu0 %v1469, 9
      %v1744 = vpop.permute.xlu0 %1743
      %1745 = vrot.lane.b32.xlu0 %v1470, 9
      %v1746 = vpop.permute.xlu0 %1745
      %1747 = vrot.lane.b32.xlu0 %v1471, 9
      %v1748 = vpop.permute.xlu0 %1747
      %1749 = vrot.lane.b32.xlu0 %v1472, 9
      %v1750 = vpop.permute.xlu0 %1749
      %1751 = vrot.lane.b32.xlu0 %v1473, 9
      %v1752 = vpop.permute.xlu0 %1751
      %1753 = vrot.lane.b32.xlu0 %v1474, 9
      %v1754 = vpop.permute.xlu0 %1753
      %v1755 = vsel %vm662, %v1752, %v1754
      %v1756 = vsel %vm662, %v1750, %v1752
      %v1757 = vsel %vm662, %v1748, %v1750
      %v1758 = vsel %vm662, %v1746, %v1748
      %v1759 = vsel %vm662, %v1744, %v1746
      %v1760 = vsel %vm662, %v1742, %v1744
      %v1761 = vsel %vm662, %v1740, %v1742
      %v1762 = vsel %vm662, %v1754, %v1740
      %1763 = vrot.lane.b32.xlu0 %v1467, 1
      %v1764 = vpop.permute.xlu0 %1763
      %1765 = vrot.lane.b32.xlu0 %v1468, 1
      %v1766 = vpop.permute.xlu0 %1765
      %1767 = vrot.lane.b32.xlu0 %v1469, 1
      %v1768 = vpop.permute.xlu0 %1767
      %1769 = vrot.lane.b32.xlu0 %v1470, 1
      %v1770 = vpop.permute.xlu0 %1769
      %1771 = vrot.lane.b32.xlu0 %v1471, 1
      %v1772 = vpop.permute.xlu0 %1771
      %1773 = vrot.lane.b32.xlu0 %v1472, 1
      %v1774 = vpop.permute.xlu0 %1773
      %1775 = vrot.lane.b32.xlu0 %v1473, 1
      %v1776 = vpop.permute.xlu0 %1775
      %1777 = vrot.lane.b32.xlu0 %v1474, 1
      %v1778 = vpop.permute.xlu0 %1777
      %v1779 = vsel %vm687, %v1776, %v1778
      %v1780 = vsel %vm687, %v1774, %v1776
      %v1781 = vsel %vm687, %v1772, %v1774
      %v1782 = vsel %vm687, %v1770, %v1772
      %v1783 = vsel %vm687, %v1768, %v1770
      %v1784 = vsel %vm687, %v1766, %v1768
      %v1785 = vsel %vm687, %v1764, %v1766
      %v1786 = vsel %vm687, %v1778, %v1764
      %1787 = vrot.lane.b32.xlu0 %v1467, 127
      %v1788 = vpop.permute.xlu0 %1787
      %1789 = vrot.lane.b32.xlu0 %v1468, 127
      %v1790 = vpop.permute.xlu0 %1789
      %1791 = vrot.lane.b32.xlu0 %v1469, 127
      %v1792 = vpop.permute.xlu0 %1791
      %1793 = vrot.lane.b32.xlu0 %v1470, 127
      %v1794 = vpop.permute.xlu0 %1793
      %1795 = vrot.lane.b32.xlu0 %v1471, 127
      %v1796 = vpop.permute.xlu0 %1795
      %1797 = vrot.lane.b32.xlu0 %v1472, 127
      %v1798 = vpop.permute.xlu0 %1797
      %1799 = vrot.lane.b32.xlu0 %v1473, 127
      %v1800 = vpop.permute.xlu0 %1799
      %1801 = vrot.lane.b32.xlu0 %v1474, 127
      %v1802 = vpop.permute.xlu0 %1801
      %v1803 = vsel %vm712, %v1800, %v1802
      %v1804 = vsel %vm712, %v1798, %v1800
      %v1805 = vsel %vm712, %v1796, %v1798
      %v1806 = vsel %vm712, %v1794, %v1796
      %v1807 = vsel %vm712, %v1792, %v1794
      %v1808 = vsel %vm712, %v1790, %v1792
      %v1809 = vsel %vm712, %v1788, %v1790
      %v1810 = vsel %vm712, %v1802, %v1788
      %1811 = vrot.lane.b32.xlu0 %v1467, 119
      %v1812 = vpop.permute.xlu0 %1811
      %1813 = vrot.lane.b32.xlu0 %v1468, 119
      %v1814 = vpop.permute.xlu0 %1813
      %1815 = vrot.lane.b32.xlu0 %v1469, 119
      %v1816 = vpop.permute.xlu0 %1815
      %1817 = vrot.lane.b32.xlu0 %v1470, 119
      %v1818 = vpop.permute.xlu0 %1817
      %1819 = vrot.lane.b32.xlu0 %v1471, 119
      %v1820 = vpop.permute.xlu0 %1819
      %1821 = vrot.lane.b32.xlu0 %v1472, 119
      %v1822 = vpop.permute.xlu0 %1821
      %1823 = vrot.lane.b32.xlu0 %v1473, 119
      %v1824 = vpop.permute.xlu0 %1823
      %1825 = vrot.lane.b32.xlu0 %v1474, 119
      %v1826 = vpop.permute.xlu0 %1825
      %v1827 = vsel %vm737, %v1824, %v1826
      %v1828 = vsel %vm737, %v1822, %v1824
      %v1829 = vsel %vm737, %v1820, %v1822
      %v1830 = vsel %vm737, %v1818, %v1820
      %v1831 = vsel %vm737, %v1816, %v1818
      %v1832 = vsel %vm737, %v1814, %v1816
      %v1833 = vsel %vm737, %v1812, %v1814
      %v1834 = vsel %vm737, %v1826, %v1812
      %1835 = vrot.lane.b32.xlu0 %v1467, 118
      %v1836 = vpop.permute.xlu0 %1835
      %1837 = vrot.lane.b32.xlu0 %v1468, 118
      %v1838 = vpop.permute.xlu0 %1837
      %1839 = vrot.lane.b32.xlu0 %v1469, 118
      %v1840 = vpop.permute.xlu0 %1839
      %1841 = vrot.lane.b32.xlu0 %v1470, 118
      %v1842 = vpop.permute.xlu0 %1841
      %1843 = vrot.lane.b32.xlu0 %v1471, 118
      %v1844 = vpop.permute.xlu0 %1843
      %1845 = vrot.lane.b32.xlu0 %v1472, 118
      %v1846 = vpop.permute.xlu0 %1845
      %1847 = vrot.lane.b32.xlu0 %v1473, 118
      %v1848 = vpop.permute.xlu0 %1847
      %1849 = vrot.lane.b32.xlu0 %v1474, 118
      %v1850 = vpop.permute.xlu0 %1849
      %v1851 = vsel %vm762, %v1848, %v1850
      %v1852 = vsel %vm762, %v1846, %v1848
      %v1853 = vsel %vm762, %v1844, %v1846
      %v1854 = vsel %vm762, %v1842, %v1844
      %v1855 = vsel %vm762, %v1840, %v1842
      %v1856 = vsel %vm762, %v1838, %v1840
      %v1857 = vsel %vm762, %v1836, %v1838
      %v1858 = vsel %vm762, %v1850, %v1836
      %1859 = vrot.lane.b32.xlu0 %v1467, 117
      %v1860 = vpop.permute.xlu0 %1859
      %1861 = vrot.lane.b32.xlu0 %v1468, 117
      %v1862 = vpop.permute.xlu0 %1861
      %1863 = vrot.lane.b32.xlu0 %v1469, 117
      %v1864 = vpop.permute.xlu0 %1863
      %1865 = vrot.lane.b32.xlu0 %v1470, 117
      %v1866 = vpop.permute.xlu0 %1865
      %1867 = vrot.lane.b32.xlu0 %v1471, 117
      %v1868 = vpop.permute.xlu0 %1867
      %1869 = vrot.lane.b32.xlu0 %v1472, 117
      %v1870 = vpop.permute.xlu0 %1869
      %1871 = vrot.lane.b32.xlu0 %v1473, 117
      %v1872 = vpop.permute.xlu0 %1871
      %1873 = vrot.lane.b32.xlu0 %v1474, 117
      %v1874 = vpop.permute.xlu0 %1873
      %v1875 = vsel %vm787, %v1872, %v1874
      %v1876 = vsel %vm787, %v1870, %v1872
      %v1877 = vsel %vm787, %v1868, %v1870
      %v1878 = vsel %vm787, %v1866, %v1868
      %v1879 = vsel %vm787, %v1864, %v1866
      %v1880 = vsel %vm787, %v1862, %v1864
      %v1881 = vsel %vm787, %v1860, %v1862
      %v1882 = vsel %vm787, %v1874, %v1860
      %1883 = vrot.lane.b32.xlu0 %v1467, 39
      %v1884 = vpop.permute.xlu0 %1883
      %1885 = vrot.lane.b32.xlu0 %v1468, 39
      %v1886 = vpop.permute.xlu0 %1885
      %1887 = vrot.lane.b32.xlu0 %v1469, 39
      %v1888 = vpop.permute.xlu0 %1887
      %1889 = vrot.lane.b32.xlu0 %v1470, 39
      %v1890 = vpop.permute.xlu0 %1889
      %1891 = vrot.lane.b32.xlu0 %v1471, 39
      %v1892 = vpop.permute.xlu0 %1891
      %1893 = vrot.lane.b32.xlu0 %v1472, 39
      %v1894 = vpop.permute.xlu0 %1893
      %1895 = vrot.lane.b32.xlu0 %v1473, 39
      %v1896 = vpop.permute.xlu0 %1895
      %1897 = vrot.lane.b32.xlu0 %v1474, 39
      %v1898 = vpop.permute.xlu0 %1897
      %v1899 = vsel %vm812, %v1896, %v1898
      %v1900 = vsel %vm812, %v1894, %v1896
      %v1901 = vsel %vm812, %v1892, %v1894
      %v1902 = vsel %vm812, %v1890, %v1892
      %v1903 = vsel %vm812, %v1888, %v1890
      %v1904 = vsel %vm812, %v1886, %v1888
      %v1905 = vsel %vm812, %v1884, %v1886
      %v1906 = vsel %vm812, %v1898, %v1884
      %1907 = vrot.lane.b32.xlu0 %v1467, 38
      %v1908 = vpop.permute.xlu0 %1907
      %1909 = vrot.lane.b32.xlu0 %v1468, 38
      %v1910 = vpop.permute.xlu0 %1909
      %1911 = vrot.lane.b32.xlu0 %v1469, 38
      %v1912 = vpop.permute.xlu0 %1911
      %1913 = vrot.lane.b32.xlu0 %v1470, 38
      %v1914 = vpop.permute.xlu0 %1913
      %1915 = vrot.lane.b32.xlu0 %v1471, 38
      %v1916 = vpop.permute.xlu0 %1915
      %1917 = vrot.lane.b32.xlu0 %v1472, 38
      %v1918 = vpop.permute.xlu0 %1917
      %1919 = vrot.lane.b32.xlu0 %v1473, 38
      %v1920 = vpop.permute.xlu0 %1919
      %1921 = vrot.lane.b32.xlu0 %v1474, 38
      %v1922 = vpop.permute.xlu0 %1921
      %v1923 = vsel %vm837, %v1920, %v1922
      %v1924 = vsel %vm837, %v1918, %v1920
      %v1925 = vsel %vm837, %v1916, %v1918
      %v1926 = vsel %vm837, %v1914, %v1916
      %v1927 = vsel %vm837, %v1912, %v1914
      %v1928 = vsel %vm837, %v1910, %v1912
      %v1929 = vsel %vm837, %v1908, %v1910
      %v1930 = vsel %vm837, %v1922, %v1908
      %1931 = vrot.lane.b32.xlu0 %v1467, 37
      %v1932 = vpop.permute.xlu0 %1931
      %1933 = vrot.lane.b32.xlu0 %v1468, 37
      %v1934 = vpop.permute.xlu0 %1933
      %1935 = vrot.lane.b32.xlu0 %v1469, 37
      %v1936 = vpop.permute.xlu0 %1935
      %1937 = vrot.lane.b32.xlu0 %v1470, 37
      %v1938 = vpop.permute.xlu0 %1937
      %1939 = vrot.lane.b32.xlu0 %v1471, 37
      %v1940 = vpop.permute.xlu0 %1939
      %1941 = vrot.lane.b32.xlu0 %v1472, 37
      %v1942 = vpop.permute.xlu0 %1941
      %1943 = vrot.lane.b32.xlu0 %v1473, 37
      %v1944 = vpop.permute.xlu0 %1943
      %1945 = vrot.lane.b32.xlu0 %v1474, 37
      %v1946 = vpop.permute.xlu0 %1945
      %v1947 = vsel %vm862, %v1944, %v1946
      %v1948 = vsel %vm862, %v1942, %v1944
      %v1949 = vsel %vm862, %v1940, %v1942
      %v1950 = vsel %vm862, %v1938, %v1940
      %v1951 = vsel %vm862, %v1936, %v1938
      %v1952 = vsel %vm862, %v1934, %v1936
      %v1953 = vsel %vm862, %v1932, %v1934
      %v1954 = vsel %vm862, %v1946, %v1932
      %1955 = vrot.lane.b32.xlu0 %v1467, 29
      %v1956 = vpop.permute.xlu0 %1955
      %1957 = vrot.lane.b32.xlu0 %v1468, 29
      %v1958 = vpop.permute.xlu0 %1957
      %1959 = vrot.lane.b32.xlu0 %v1469, 29
      %v1960 = vpop.permute.xlu0 %1959
      %1961 = vrot.lane.b32.xlu0 %v1470, 29
      %v1962 = vpop.permute.xlu0 %1961
      %1963 = vrot.lane.b32.xlu0 %v1471, 29
      %v1964 = vpop.permute.xlu0 %1963
      %1965 = vrot.lane.b32.xlu0 %v1472, 29
      %v1966 = vpop.permute.xlu0 %1965
      %1967 = vrot.lane.b32.xlu0 %v1473, 29
      %v1968 = vpop.permute.xlu0 %1967
      %1969 = vrot.lane.b32.xlu0 %v1474, 29
      %v1970 = vpop.permute.xlu0 %1969
      %v1971 = vsel %vm887, %v1968, %v1970
      %v1972 = vsel %vm887, %v1966, %v1968
      %v1973 = vsel %vm887, %v1964, %v1966
      %v1974 = vsel %vm887, %v1962, %v1964
      %v1975 = vsel %vm887, %v1960, %v1962
      %v1976 = vsel %vm887, %v1958, %v1960
      %v1977 = vsel %vm887, %v1956, %v1958
      %v1978 = vsel %vm887, %v1970, %v1956
      %1979 = vrot.lane.b32.xlu0 %v1467, 28
      %v1980 = vpop.permute.xlu0 %1979
      %1981 = vrot.lane.b32.xlu0 %v1468, 28
      %v1982 = vpop.permute.xlu0 %1981
      %1983 = vrot.lane.b32.xlu0 %v1469, 28
      %v1984 = vpop.permute.xlu0 %1983
      %1985 = vrot.lane.b32.xlu0 %v1470, 28
      %v1986 = vpop.permute.xlu0 %1985
      %1987 = vrot.lane.b32.xlu0 %v1471, 28
      %v1988 = vpop.permute.xlu0 %1987
      %1989 = vrot.lane.b32.xlu0 %v1472, 28
      %v1990 = vpop.permute.xlu0 %1989
      %1991 = vrot.lane.b32.xlu0 %v1473, 28
      %v1992 = vpop.permute.xlu0 %1991
      %1993 = vrot.lane.b32.xlu0 %v1474, 28
      %v1994 = vpop.permute.xlu0 %1993
      %v1995 = vsel %vm912, %v1992, %v1994
      %v1996 = vsel %vm912, %v1990, %v1992
      %v1997 = vsel %vm912, %v1988, %v1990
      %v1998 = vsel %vm912, %v1986, %v1988
      %v1999 = vsel %vm912, %v1984, %v1986
      %v2000 = vsel %vm912, %v1982, %v1984
      %v2001 = vsel %vm912, %v1980, %v1982
      %v2002 = vsel %vm912, %v1994, %v1980
      %2003 = vrot.lane.b32.xlu0 %v1467, 27
      %v2004 = vpop.permute.xlu0 %2003
      %2005 = vrot.lane.b32.xlu0 %v1468, 27
      %v2006 = vpop.permute.xlu0 %2005
      %2007 = vrot.lane.b32.xlu0 %v1469, 27
      %v2008 = vpop.permute.xlu0 %2007
      %2009 = vrot.lane.b32.xlu0 %v1470, 27
      %v2010 = vpop.permute.xlu0 %2009
      %2011 = vrot.lane.b32.xlu0 %v1471, 27
      %v2012 = vpop.permute.xlu0 %2011
      %2013 = vrot.lane.b32.xlu0 %v1472, 27
      %v2014 = vpop.permute.xlu0 %2013
      %2015 = vrot.lane.b32.xlu0 %v1473, 27
      %v2016 = vpop.permute.xlu0 %2015
      %2017 = vrot.lane.b32.xlu0 %v1474, 27
      %v2018 = vpop.permute.xlu0 %2017
      %v2019 = vsel %vm937, %v2016, %v2018
      %v2020 = vsel %vm937, %v2014, %v2016
      %v2021 = vsel %vm937, %v2012, %v2014
      %v2022 = vsel %vm937, %v2010, %v2012
      %v2023 = vsel %vm937, %v2008, %v2010
      %v2024 = vsel %vm937, %v2006, %v2008
      %v2025 = vsel %vm937, %v2004, %v2006
      %v2026 = vsel %vm937, %v2018, %v2004
      %2027 = vrot.lane.b32.xlu0 %v1467, 19
      %v2028 = vpop.permute.xlu0 %2027
      %2029 = vrot.lane.b32.xlu0 %v1468, 19
      %v2030 = vpop.permute.xlu0 %2029
      %2031 = vrot.lane.b32.xlu0 %v1469, 19
      %v2032 = vpop.permute.xlu0 %2031
      %2033 = vrot.lane.b32.xlu0 %v1470, 19
      %v2034 = vpop.permute.xlu0 %2033
      %2035 = vrot.lane.b32.xlu0 %v1471, 19
      %v2036 = vpop.permute.xlu0 %2035
      %2037 = vrot.lane.b32.xlu0 %v1472, 19
      %v2038 = vpop.permute.xlu0 %2037
      %2039 = vrot.lane.b32.xlu0 %v1473, 19
      %v2040 = vpop.permute.xlu0 %2039
      %2041 = vrot.lane.b32.xlu0 %v1474, 19
      %v2042 = vpop.permute.xlu0 %2041
      %v2043 = vsel %vm962, %v2040, %v2042
      %v2044 = vsel %vm962, %v2038, %v2040
      %v2045 = vsel %vm962, %v2036, %v2038
      %v2046 = vsel %vm962, %v2034, %v2036
      %v2047 = vsel %vm962, %v2032, %v2034
      %v2048 = vsel %vm962, %v2030, %v2032
      %v2049 = vsel %vm962, %v2028, %v2030
      %v2050 = vsel %vm962, %v2042, %v2028
      %2051 = vrot.lane.b32.xlu0 %v1467, 18
      %v2052 = vpop.permute.xlu0 %2051
      %2053 = vrot.lane.b32.xlu0 %v1468, 18
      %v2054 = vpop.permute.xlu0 %2053
      %2055 = vrot.lane.b32.xlu0 %v1469, 18
      %v2056 = vpop.permute.xlu0 %2055
      %2057 = vrot.lane.b32.xlu0 %v1470, 18
      %v2058 = vpop.permute.xlu0 %2057
      %2059 = vrot.lane.b32.xlu0 %v1471, 18
      %v2060 = vpop.permute.xlu0 %2059
      %2061 = vrot.lane.b32.xlu0 %v1472, 18
      %v2062 = vpop.permute.xlu0 %2061
      %2063 = vrot.lane.b32.xlu0 %v1473, 18
      %v2064 = vpop.permute.xlu0 %2063
      %2065 = vrot.lane.b32.xlu0 %v1474, 18
      %v2066 = vpop.permute.xlu0 %2065
      %v2067 = vsel %vm987, %v2064, %v2066
      %v2068 = vsel %vm987, %v2062, %v2064
      %v2069 = vsel %vm987, %v2060, %v2062
      %v2070 = vsel %vm987, %v2058, %v2060
      %v2071 = vsel %vm987, %v2056, %v2058
      %v2072 = vsel %vm987, %v2054, %v2056
      %v2073 = vsel %vm987, %v2052, %v2054
      %v2074 = vsel %vm987, %v2066, %v2052
      %2075 = vrot.lane.b32.xlu0 %v1467, 17
      %v2076 = vpop.permute.xlu0 %2075
      %2077 = vrot.lane.b32.xlu0 %v1468, 17
      %v2078 = vpop.permute.xlu0 %2077
      %2079 = vrot.lane.b32.xlu0 %v1469, 17
      %v2080 = vpop.permute.xlu0 %2079
      %2081 = vrot.lane.b32.xlu0 %v1470, 17
      %v2082 = vpop.permute.xlu0 %2081
      %2083 = vrot.lane.b32.xlu0 %v1471, 17
      %v2084 = vpop.permute.xlu0 %2083
      %2085 = vrot.lane.b32.xlu0 %v1472, 17
      %v2086 = vpop.permute.xlu0 %2085
      %2087 = vrot.lane.b32.xlu0 %v1473, 17
      %v2088 = vpop.permute.xlu0 %2087
      %2089 = vrot.lane.b32.xlu0 %v1474, 17
      %v2090 = vpop.permute.xlu0 %2089
      %v2091 = vsel %vm1012, %v2088, %v2090
      %v2092 = vsel %vm1012, %v2086, %v2088
      %v2093 = vsel %vm1012, %v2084, %v2086
      %v2094 = vsel %vm1012, %v2082, %v2084
      %v2095 = vsel %vm1012, %v2080, %v2082
      %v2096 = vsel %vm1012, %v2078, %v2080
      %v2097 = vsel %vm1012, %v2076, %v2078
      %v2098 = vsel %vm1012, %v2090, %v2076
      %v2099 = vld [vmem:[%s6] sm:$0xff]
      %v2100 = vld [vmem:[%s6 + $0x8] sm:$0xff]
      %v2101 = vld [vmem:[%s7] sm:$0xff]
      %2103 = vset.pattern.permute.xlu0 0
      %2104 = vperm.xlu0 %2103, %v2101
      %v2105 = vpop.permute.xlu0 %2104
      %v2108 = vsel %vm1029, %v2100, 0
      %2110 = vmatprep.subr.mxu0 %v1497
      %2111 = vmatpush1.msra.mxu0 %v1498
      %2112 = vmatprep.subr.mxu0 %v1521
      %2113 = vmatpush1.msra.mxu0 %v1522
      %2114 = vmatprep.subr.mxu0 %v1545
      %2115 = vmatpush1.msra.mxu0 %v1546
      %2116 = vmatprep.subr.mxu0 %v1569
      %2117 = vmatpush1.msra.mxu0 %v1570
      %2118 = vmatprep.subr.mxu0 %v1593
      %2119 = vmatpush1.msra.mxu0 %v1594
      %2120 = vmatprep.subr.mxu0 %v1617
      %2121 = vmatpush1.msra.mxu0 %v1618
      %2122 = vmatprep.subr.mxu0 %v1641
      %2123 = vmatpush1.msra.mxu0 %v1642
      %2124 = vmatprep.subr.mxu0 %v1665
      %2125 = vmatpush1.msra.mxu0 %v1666
      %2126 = vmatprep.subr.mxu0 %v1689
      %2127 = vmatpush1.msra.mxu0 %v1690
      %2128 = vmatprep.subr.mxu0 %v1713
      %2129 = vmatpush1.msra.mxu0 %v1714
      %2130 = vmatprep.subr.mxu0 %v1737
      %2131 = vmatpush1.msra.mxu0 %v1738
      %2132 = vmatprep.subr.mxu0 %v1761
      %2133 = vmatpush1.msra.mxu0 %v1762
      %2134 = vmatprep.subr.mxu0 %v1785
      %2135 = vmatpush1.msra.mxu0 %v1786
      %2136 = vmatprep.subr.mxu0 %v1468
      %2137 = vmatpush1.msra.mxu0 %v1467
      %2138 = vmatprep.subr.mxu0 %v1808
      %2139 = vmatpush1.msra.mxu0 %v1809
      %2140 = vmatprep.subr.mxu0 %v1832
      %2141 = vmatpush1.msra.mxu0 %v1833
      %2142 = vmatprep.subr.mxu0 %v1856
      %2143 = vmatpush1.msra.mxu0 %v1857
      %2144 = vmatprep.subr.mxu0 %v1880
      %2145 = vmatpush1.msra.mxu0 %v1881
      %2146 = vmatprep.subr.mxu0 %v1904
      %2147 = vmatpush1.msra.mxu0 %v1905
      %2148 = vmatprep.subr.mxu0 %v1928
      %2149 = vmatpush1.msra.mxu0 %v1929
      %2150 = vmatprep.subr.mxu0 %v1952
      %2151 = vmatpush1.msra.mxu0 %v1953
      %2152 = vmatprep.subr.mxu0 %v1976
      %2153 = vmatpush1.msra.mxu0 %v1977
      %2154 = vmatprep.subr.mxu0 %v2000
      %2155 = vmatpush1.msra.mxu0 %v2001
      %2156 = vmatprep.subr.mxu0 %v2024
      %2157 = vmatpush1.msra.mxu0 %v2025
      %2158 = vmatprep.subr.mxu0 %v2048
      %2159 = vmatpush1.msra.mxu0 %v2049
      %2160 = vmatprep.subr.mxu0 %v2072
      %2161 = vmatpush1.msra.mxu0 %v2073
      %2162 = vmatprep.subr.mxu0 %v2096
      %2163 = vmatpush1.msra.mxu0 %v2097
      %2164 = vmatprep.subr.mxu0 0.0
      %2165 = vmatpush1.msra.mxu0 0.0
      %2166 = vmatprep.subr.mxu0 0.0
      %2167 = vmatpush1.msra.mxu0 0.0
      %2168 = vmatprep.subr.mxu0 0.0
      %2169 = vmatpush1.msra.mxu0 0.0
      %2170 = vmatprep.subr.mxu0 0.0
      %2171 = vmatpush1.msra.mxu0 0.0
      %2172 = vmatprep.subr.mxu0 0.0
      %2173 = vmatpush1.msra.mxu0 0.0
      %2174 = vmatprep.mubr.f32.mxu0 %v2108
      %2175 = vmatmul.mubr.f32.gmra.mrb[0].mxu0 %v2099
      %v2176 = vpop.f32.mrb[0].mxu0
      %v2177 = vadd.f32 %v2105, %v2176
      %v2178 = vpop.f32.mrb[0].mxu0
      %v2179 = vadd.f32 %v2105, %v2178
      %2180 = vdwg.mxu0
      %2181 = vmatprep.subr.mxu0 %v1495
      %2182 = vmatpush1.msra.mxu0 %v1496
      %2183 = vmatprep.subr.mxu0 %v1519
      %2184 = vmatpush1.msra.mxu0 %v1520
      %2185 = vmatprep.subr.mxu0 %v1543
      %2186 = vmatpush1.msra.mxu0 %v1544
      %2187 = vmatprep.subr.mxu0 %v1567
      %2188 = vmatpush1.msra.mxu0 %v1568
      %2189 = vmatprep.subr.mxu0 %v1591
      %2190 = vmatpush1.msra.mxu0 %v1592
      %2191 = vmatprep.subr.mxu0 %v1615
      %2192 = vmatpush1.msra.mxu0 %v1616
      %2193 = vmatprep.subr.mxu0 %v1639
      %2194 = vmatpush1.msra.mxu0 %v1640
      %2195 = vmatprep.subr.mxu0 %v1663
      %2196 = vmatpush1.msra.mxu0 %v1664
      %2197 = vmatprep.subr.mxu0 %v1687
      %2198 = vmatpush1.msra.mxu0 %v1688
      %2199 = vmatprep.subr.mxu0 %v1711
      %2200 = vmatpush1.msra.mxu0 %v1712
      %2201 = vmatprep.subr.mxu0 %v1735
      %2202 = vmatpush1.msra.mxu0 %v1736
      %2203 = vmatprep.subr.mxu0 %v1759
      %2204 = vmatpush1.msra.mxu0 %v1760
      %2205 = vmatprep.subr.mxu0 %v1783
      %2206 = vmatpush1.msra.mxu0 %v1784
      %2207 = vmatprep.subr.mxu0 %v1470
      %2208 = vmatpush1.msra.mxu0 %v1469
      %2209 = vmatprep.subr.mxu0 %v1806
      %2210 = vmatpush1.msra.mxu0 %v1807
      %2211 = vmatprep.subr.mxu0 %v1830
      %2212 = vmatpush1.msra.mxu0 %v1831
      %2213 = vmatprep.subr.mxu0 %v1854
      %2214 = vmatpush1.msra.mxu0 %v1855
      %2215 = vmatprep.subr.mxu0 %v1878
      %2216 = vmatpush1.msra.mxu0 %v1879
      %2217 = vmatprep.subr.mxu0 %v1902
      %2218 = vmatpush1.msra.mxu0 %v1903
      %2219 = vmatprep.subr.mxu0 %v1926
      %2220 = vmatpush1.msra.mxu0 %v1927
      %2221 = vmatprep.subr.mxu0 %v1950
      %2222 = vmatpush1.msra.mxu0 %v1951
      %2223 = vmatprep.subr.mxu0 %v1974
      %2224 = vmatpush1.msra.mxu0 %v1975
      %2225 = vmatprep.subr.mxu0 %v1998
      %2226 = vmatpush1.msra.mxu0 %v1999
      %2227 = vmatprep.subr.mxu0 %v2022
      %2228 = vmatpush1.msra.mxu0 %v2023
      %2229 = vmatprep.subr.mxu0 %v2046
      %2230 = vmatpush1.msra.mxu0 %v2047
      %2231 = vmatprep.subr.mxu0 %v2070
      %2232 = vmatpush1.msra.mxu0 %v2071
      %2233 = vmatprep.subr.mxu0 %v2094
      %2234 = vmatpush1.msra.mxu0 %v2095
      %2235 = vmatprep.subr.mxu0 0.0
      %2236 = vmatpush1.msra.mxu0 0.0
      %2237 = vmatprep.subr.mxu0 0.0
      %2238 = vmatpush1.msra.mxu0 0.0
      %2239 = vmatprep.subr.mxu0 0.0
      %2240 = vmatpush1.msra.mxu0 0.0
      %2241 = vmatprep.subr.mxu0 0.0
      %2242 = vmatpush1.msra.mxu0 0.0
      %2243 = vmatprep.subr.mxu0 0.0
      %2244 = vmatpush1.msra.mxu0 0.0
      %2245 = vmatprep.mubr.f32.mxu0 %v2108
      %2246 = vmatmul.mubr.f32.gmra.mrb[0].mxu0 %v2099
      %v2247 = vpop.f32.mrb[0].mxu0
      %v2248 = vadd.f32 %v2105, %v2247
      %v2249 = vpop.f32.mrb[0].mxu0
      %v2250 = vadd.f32 %v2105, %v2249
      %2251 = vdwg.mxu0
      %2252 = vmatprep.subr.mxu0 %v1493
      %2253 = vmatpush1.msra.mxu0 %v1494
      %2254 = vmatprep.subr.mxu0 %v1517
      %2255 = vmatpush1.msra.mxu0 %v1518
      %2256 = vmatprep.subr.mxu0 %v1541
      %2257 = vmatpush1.msra.mxu0 %v1542
      %2258 = vmatprep.subr.mxu0 %v1565
      %2259 = vmatpush1.msra.mxu0 %v1566
      %2260 = vmatprep.subr.mxu0 %v1589
      %2261 = vmatpush1.msra.mxu0 %v1590
      %2262 = vmatprep.subr.mxu0 %v1613
      %2263 = vmatpush1.msra.mxu0 %v1614
      %2264 = vmatprep.subr.mxu0 %v1637
      %2265 = vmatpush1.msra.mxu0 %v1638
      %2266 = vmatprep.subr.mxu0 %v1661
      %2267 = vmatpush1.msra.mxu0 %v1662
      %2268 = vmatprep.subr.mxu0 %v1685
      %2269 = vmatpush1.msra.mxu0 %v1686
      %2270 = vmatprep.subr.mxu0 %v1709
      %2271 = vmatpush1.msra.mxu0 %v1710
      %2272 = vmatprep.subr.mxu0 %v1733
      %2273 = vmatpush1.msra.mxu0 %v1734
      %2274 = vmatprep.subr.mxu0 %v1757
      %2275 = vmatpush1.msra.mxu0 %v1758
      %2276 = vmatprep.subr.mxu0 %v1781
      %2277 = vmatpush1.msra.mxu0 %v1782
      %2278 = vmatprep.subr.mxu0 %v1472
      %2279 = vmatpush1.msra.mxu0 %v1471
      %2280 = vmatprep.subr.mxu0 %v1804
      %2281 = vmatpush1.msra.mxu0 %v1805
      %2282 = vmatprep.subr.mxu0 %v1828
      %2283 = vmatpush1.msra.mxu0 %v1829
      %2284 = vmatprep.subr.mxu0 %v1852
      %2285 = vmatpush1.msra.mxu0 %v1853
      %2286 = vmatprep.subr.mxu0 %v1876
      %2287 = vmatpush1.msra.mxu0 %v1877
      %2288 = vmatprep.subr.mxu0 %v1900
      %2289 = vmatpush1.msra.mxu0 %v1901
      %2290 = vmatprep.subr.mxu0 %v1924
      %2291 = vmatpush1.msra.mxu0 %v1925
      %2292 = vmatprep.subr.mxu0 %v1948
      %2293 = vmatpush1.msra.mxu0 %v1949
      %2294 = vmatprep.subr.mxu0 %v1972
      %2295 = vmatpush1.msra.mxu0 %v1973
      %2296 = vmatprep.subr.mxu0 %v1996
      %2297 = vmatpush1.msra.mxu0 %v1997
      %2298 = vmatprep.subr.mxu0 %v2020
      %2299 = vmatpush1.msra.mxu0 %v2021
      %2300 = vmatprep.subr.mxu0 %v2044
      %2301 = vmatpush1.msra.mxu0 %v2045
      %2302 = vmatprep.subr.mxu0 %v2068
      %2303 = vmatpush1.msra.mxu0 %v2069
      %2304 = vmatprep.subr.mxu0 %v2092
      %2305 = vmatpush1.msra.mxu0 %v2093
      %2306 = vmatprep.subr.mxu0 0.0
      %2307 = vmatpush1.msra.mxu0 0.0
      %2308 = vmatprep.subr.mxu0 0.0
      %2309 = vmatpush1.msra.mxu0 0.0
      %2310 = vmatprep.subr.mxu0 0.0
      %2311 = vmatpush1.msra.mxu0 0.0
      %2312 = vmatprep.subr.mxu0 0.0
      %2313 = vmatpush1.msra.mxu0 0.0
      %2314 = vmatprep.subr.mxu0 0.0
      %2315 = vmatpush1.msra.mxu0 0.0
      %2316 = vmatprep.mubr.f32.mxu0 %v2108
      %2317 = vmatmul.mubr.f32.gmra.mrb[0].mxu0 %v2099
      %v2318 = vpop.f32.mrb[0].mxu0
      %v2319 = vadd.f32 %v2105, %v2318
      %v2320 = vpop.f32.mrb[0].mxu0
      %v2321 = vadd.f32 %v2105, %v2320
      %2322 = vdwg.mxu0
      %2323 = vmatprep.subr.mxu0 %v1491
      %2324 = vmatpush1.msra.mxu0 %v1492
      %2325 = vmatprep.subr.mxu0 %v1515
      %2326 = vmatpush1.msra.mxu0 %v1516
      %2327 = vmatprep.subr.mxu0 %v1539
      %2328 = vmatpush1.msra.mxu0 %v1540
      %2329 = vmatprep.subr.mxu0 %v1563
      %2330 = vmatpush1.msra.mxu0 %v1564
      %2331 = vmatprep.subr.mxu0 %v1587
      %2332 = vmatpush1.msra.mxu0 %v1588
      %2333 = vmatprep.subr.mxu0 %v1611
      %2334 = vmatpush1.msra.mxu0 %v1612
      %2335 = vmatprep.subr.mxu0 %v1635
      %2336 = vmatpush1.msra.mxu0 %v1636
      %2337 = vmatprep.subr.mxu0 %v1659
      %2338 = vmatpush1.msra.mxu0 %v1660
      %2339 = vmatprep.subr.mxu0 %v1683
      %2340 = vmatpush1.msra.mxu0 %v1684
      %2341 = vmatprep.subr.mxu0 %v1707
      %2342 = vmatpush1.msra.mxu0 %v1708
      %2343 = vmatprep.subr.mxu0 %v1731
      %2344 = vmatpush1.msra.mxu0 %v1732
      %2345 = vmatprep.subr.mxu0 %v1755
      %2346 = vmatpush1.msra.mxu0 %v1756
      %2347 = vmatprep.subr.mxu0 %v1779
      %2348 = vmatpush1.msra.mxu0 %v1780
      %2349 = vmatprep.subr.mxu0 %v1474
      %2350 = vmatpush1.msra.mxu0 %v1473
      %2351 = vmatprep.subr.mxu0 %v1810
      %2352 = vmatpush1.msra.mxu0 %v1803
      %2353 = vmatprep.subr.mxu0 %v1834
      %2354 = vmatpush1.msra.mxu0 %v1827
      %2355 = vmatprep.subr.mxu0 %v1858
      %2356 = vmatpush1.msra.mxu0 %v1851
      %2357 = vmatprep.subr.mxu0 %v1882
      %2358 = vmatpush1.msra.mxu0 %v1875
      %2359 = vmatprep.subr.mxu0 %v1906
      %2360 = vmatpush1.msra.mxu0 %v1899
      %2361 = vmatprep.subr.mxu0 %v1930
      %2362 = vmatpush1.msra.mxu0 %v1923
      %2363 = vmatprep.subr.mxu0 %v1954
      %2364 = vmatpush1.msra.mxu0 %v1947
      %2365 = vmatprep.subr.mxu0 %v1978
      %2366 = vmatpush1.msra.mxu0 %v1971
      %2367 = vmatprep.subr.mxu0 %v2002
      %2368 = vmatpush1.msra.mxu0 %v1995
      %2369 = vmatprep.subr.mxu0 %v2026
      %2370 = vmatpush1.msra.mxu0 %v2019
      %2371 = vmatprep.subr.mxu0 %v2050
      %2372 = vmatpush1.msra.mxu0 %v2043
      %2373 = vmatprep.subr.mxu0 %v2074
      %2374 = vmatpush1.msra.mxu0 %v2067
      %2375 = vmatprep.subr.mxu0 %v2098
      %2376 = vmatpush1.msra.mxu0 %v2091
      %2377 = vmatprep.subr.mxu0 0.0
      %2378 = vmatpush1.msra.mxu0 0.0
      %2379 = vmatprep.subr.mxu0 0.0
      %2380 = vmatpush1.msra.mxu0 0.0
      %2381 = vmatprep.subr.mxu0 0.0
      %2382 = vmatpush1.msra.mxu0 0.0
      %2383 = vmatprep.subr.mxu0 0.0
      %2384 = vmatpush1.msra.mxu0 0.0
      %2385 = vmatprep.subr.mxu0 0.0
      %2386 = vmatpush1.msra.mxu0 0.0
      %2387 = vmatprep.mubr.f32.mxu0 %v2108
      %2388 = vmatmul.mubr.f32.gmra.mrb[0].mxu0 %v2099
      %v2389 = vpop.f32.mrb[0].mxu0
      %v2390 = vadd.f32 %v2105, %v2389
      %v2391 = vpop.f32.mrb[0].mxu0
      %v2392 = vadd.f32 %v2105, %v2391
      %2393 = vdwg.mxu0
      %v2394 = vmul.f32 %v2177, %v1321
      %v2395 = vmul.f32 %v2179, %v1325
      %v2396 = vmul.f32 %v2248, %v1329
      %v2397 = vmul.f32 %v2250, %v1333
      %v2398 = vmul.f32 %v2319, %v1337
      %v2399 = vmul.f32 %v2321, %v1341
      %v2400 = vmul.f32 %v2390, %v1345
      %v2401 = vmul.f32 %v2392, %v1349
      %v2402 = vadd.f32 %v2394, %v2395
      %v2403 = vadd.f32 %v2402, %v2396
      %v2404 = vadd.f32 %v2403, %v2397
      %v2405 = vadd.f32 %v2404, %v2398
      %v2406 = vadd.f32 %v2405, %v2399
      %v2407 = vadd.f32 %v2406, %v2400
      %v2408 = vadd.f32 %v2407, %v2401
      %2409 = vadd.xlane.f32.xlu0 %v2408
      %v2410 = vpop.xlane.xlu0 %2409
      %v2411 = vmul.f32 %v2394, %v2394
      %v2412 = vmul.f32 %v2395, %v2395
      %v2413 = vmul.f32 %v2396, %v2396
      %v2414 = vmul.f32 %v2397, %v2397
      %v2415 = vmul.f32 %v2398, %v2398
      %v2416 = vmul.f32 %v2399, %v2399
      %v2417 = vmul.f32 %v2400, %v2400
      %v2418 = vmul.f32 %v2401, %v2401
      %v2419 = vadd.f32 %v2411, %v2412
      %v2420 = vadd.f32 %v2419, %v2413
      %v2421 = vadd.f32 %v2420, %v2414
      %v2422 = vadd.f32 %v2421, %v2415
      %v2423 = vadd.f32 %v2422, %v2416
      %v2424 = vadd.f32 %v2423, %v2417
      %v2425 = vadd.f32 %v2424, %v2418
      %2426 = vadd.xlane.f32.xlu0 %v2425
      %v2427 = vpop.xlane.xlu0 %2426
      %v2428 = vmul.f32 %v2410, 0.001953125
      %v2429 = vmul.f32 %v2427, 0.001953125
      %v2430 = vmul.f32 %v2428, %v2428
      %v2431 = vsub.f32 %v2429, %v2430
      %v2432 = vmax.f32 %v2431, 0.0
      %v2433 = vsub.f32 %v2177, %v2428
      %v2434 = vsub.f32 %v2179, %v2428
      %v2435 = vsub.f32 %v2248, %v2428
      %v2436 = vsub.f32 %v2250, %v2428
      %v2437 = vsub.f32 %v2319, %v2428
      %v2438 = vsub.f32 %v2321, %v2428
      %v2439 = vsub.f32 %v2390, %v2428
      %v2440 = vsub.f32 %v2392, %v2428
      %v2441 = vadd.f32 %v2432, 1e-05
      %v2442 = vrsqrt.pop %v2441
      %v2443 = vmul.f32 %v2433, %v2442
      %v2444 = vmul.f32 %v2434, %v2442
      %v2445 = vmul.f32 %v2435, %v2442
      %v2446 = vmul.f32 %v2436, %v2442
      %v2447 = vmul.f32 %v2437, %v2442
      %v2448 = vmul.f32 %v2438, %v2442
      %v2449 = vmul.f32 %v2439, %v2442
      %v2450 = vmul.f32 %v2440, %v2442
      %v2451 = vld [vmem:[%s8] sm:$0xff]
      %2453 = vset.pattern.permute.xlu0 0
      %2454 = vperm.xlu0 %2453, %v2451
      %v2455 = vpop.permute.xlu0 %2454
      %v2457 = vmul.f32 %v2443, %v2455
      %v2458 = vmul.f32 %v2444, %v2455
      %v2459 = vmul.f32 %v2445, %v2455
      %v2460 = vmul.f32 %v2446, %v2455
      %v2461 = vmul.f32 %v2447, %v2455
      %v2462 = vmul.f32 %v2448, %v2455
      %v2463 = vmul.f32 %v2449, %v2455
      %v2464 = vmul.f32 %v2450, %v2455
      %v2465 = vld [vmem:[%s9] sm:$0xff]
      %2467 = vset.pattern.permute.xlu0 0
      %2468 = vperm.xlu0 %2467, %v2465
      %v2469 = vpop.permute.xlu0 %2468
      %v2471 = vadd.f32 %v2457, %v2469
      %v2472 = vadd.f32 %v2458, %v2469
      %v2473 = vadd.f32 %v2459, %v2469
      %v2474 = vadd.f32 %v2460, %v2469
      %v2475 = vadd.f32 %v2461, %v2469
      %v2476 = vadd.f32 %v2462, %v2469
      %v2477 = vadd.f32 %v2463, %v2469
      %v2478 = vadd.f32 %v2464, %v2469
      %vm2479 = vcmp.ge.f32.partialorder %v2471, 0.0
      %vm2480 = vcmp.ge.f32.partialorder %v2472, 0.0
      %vm2481 = vcmp.ge.f32.partialorder %v2473, 0.0
      %vm2482 = vcmp.ge.f32.partialorder %v2474, 0.0
      %vm2483 = vcmp.ge.f32.partialorder %v2475, 0.0
      %vm2484 = vcmp.ge.f32.partialorder %v2476, 0.0
      %vm2485 = vcmp.ge.f32.partialorder %v2477, 0.0
      %vm2486 = vcmp.ge.f32.partialorder %v2478, 0.0
      %v2487 = vmul.f32 %v2471, 0.01
      %v2488 = vmul.f32 %v2472, 0.01
      %v2489 = vmul.f32 %v2473, 0.01
      %v2490 = vmul.f32 %v2474, 0.01
      %v2491 = vmul.f32 %v2475, 0.01
      %v2492 = vmul.f32 %v2476, 0.01
      %v2493 = vmul.f32 %v2477, 0.01
      %v2494 = vmul.f32 %v2478, 0.01
      %v2495 = vsel %vm2479, %v2471, %v2487
      %v2496 = vsel %vm2480, %v2472, %v2488
      %v2497 = vsel %vm2481, %v2473, %v2489
      %v2498 = vsel %vm2482, %v2474, %v2490
      %v2499 = vsel %vm2483, %v2475, %v2491
      %v2500 = vsel %vm2484, %v2476, %v2492
      %v2501 = vsel %vm2485, %v2477, %v2493
      %v2502 = vsel %vm2486, %v2478, %v2494
      %v2503 = vmul.f32 %v2495, %v1321
      %v2504 = vmul.f32 %v2496, %v1325
      %v2505 = vmul.f32 %v2497, %v1329
      %v2506 = vmul.f32 %v2498, %v1333
      %v2507 = vmul.f32 %v2499, %v1337
      %v2508 = vmul.f32 %v2500, %v1341
      %v2509 = vmul.f32 %v2501, %v1345
      %v2510 = vmul.f32 %v2502, %v1349
      %2511 = vst [vmem:[%s359] sm:$0xff] %v2503
      %2512 = vst [vmem:[%s359 + $0x8] sm:$0xff] %v2504
      %2513 = vst [vmem:[%s359 + $0x10] sm:$0xff] %v2505
      %2514 = vst [vmem:[%s359 + $0x18] sm:$0xff] %v2506
      %2515 = vst [vmem:[%s359 + $0x20] sm:$0xff] %v2507
      %2516 = vst [vmem:[%s359 + $0x28] sm:$0xff] %v2508
      %2517 = vst [vmem:[%s359 + $0x30] sm:$0xff] %v2509
      %2518 = vst [vmem:[%s359 + $0x38] sm:$0xff] %v2510
      %p2519 = scmp.lt.s32.totalorder %s21, 1
      %s2520 = scalar_select %p2519, %s21, 1
      %s2521 = smul.addr %s2520, 8
      %s2522 = smul.addr %s2521, 8
      %s2523 = scalar_lea.vmem %s10, %s2522
      // Predicated region
      $region61: #{_lambda_.1} parent=59 // pred_check
        %p2524 = pneg %p254
      $region62: #{_lambda_.1} parent=59 // pred_check_branch
        %2526 = sbr.rel (%p2524) target = $region64
      $region63: #{_lambda_.1} parent=59 // pred_region
        _
      $region64: #{_lambda_.1} parent=59 // pred_fallthru
        _
    $region60: #{_lambda_.1} parent=5 // pred_fallthru
      _
    %p2527 = scmp.le.s32.totalorder 2, %s16
    // Predicated region
    $region65: #{_lambda_.1} parent=5 // pred_check
      %p2528 = pneg %p2527
    $region66: #{_lambda_.1} parent=5 // pred_check_branch
      %2530 = sbr.rel (%p2528) target = $region68
    $region67: #{_lambda_.1} parent=5 // pred_region
      %s2531 = ssub.s32 %s16, 2
      // Predicated region
      $region69: #{_lambda_.1} parent=67 // pred_check
        %p2532 = pneg %p260
      $region70: #{_lambda_.1} parent=67 // pred_check_branch
        %2534 = sbr.rel (%p2532) target = $region72
      $region71: #{_lambda_.1} parent=67 // pred_region
        %p2535 = scmp.lt.s32.totalorder %s22, 1
        %s2536 = scalar_select %p2535, %s22, 1
        %s2537 = smul.addr %s2536, 8
        %s2538 = smul.addr %s2537, 8
        %s2539 = scalar_lea.vmem %s10, %s2538
      $region72: #{_lambda_.1} parent=67 // pred_fallthru
        _
    $region68: #{_lambda_.1} parent=5 // pred_fallthru
      _
  $region6: #{_lambda_.1} parent=0 // loop_footer
    %s20 = sadd.s32 1, %s16
  $region7: #{_lambda_.1} parent=0 // loop_footer_branch
    %15 = sbr.rel target = $region3
  $region8: #{_lambda_.1} parent=0 // loop_exit
    _

</llo_original>
